<compile_context>
chip_gen: v7x
topology: tpu7x:2x2x1
jax: 0.10.0
libtpu: 0.0.40
codegen_flags: <defaults>
</compile_context>

<pallas_src>
import functools

import jax
import jax.numpy as jnp
from jax.experimental import pallas as pl
from jax.experimental.pallas import tpu as pltpu


def _layer_norm(x, gamma, beta, eps):
    mean = jnp.mean(x, axis=-1, keepdims=True)
    var = jnp.mean(jnp.square(x - mean), axis=-1, keepdims=True)
    return (x - mean) * jax.lax.rsqrt(var + eps) * gamma + beta


def _fft_block_kernel(xq_ref, xkv_ref,
                      wq_ref, bq_ref, wk_ref, bk_ref, wv_ref, bv_ref,
                      wfc_ref, bfc_ref, g1_ref, be1_ref,
                      w1_ref, b1_ref, w2_ref, b2_ref, g2_ref, be2_ref,
                      *out_refs,
                      n_head, d_k, eps, mxu_dtype, return_attn):
    if return_attn:
        out_ref, attn_ref = out_refs
    else:
        (out_ref,) = out_refs

    xq = xq_ref[0].astype(jnp.float32)        # (tq, D)  -- residual stays f32
    xkv = xkv_ref[0]                          # (Lk, D)  -- full sequence for K/V
    tq, d_model = xq.shape
    lk = xkv.shape[0]

    # Broadcast activations over the head axis so every attention matmul is a
    # single head-batched 3-D dot_general (no per-head loop, no lane slicing).
    xq_m = jnp.broadcast_to(xq.astype(mxu_dtype), (n_head, tq, d_model))
    xkv_m = jnp.broadcast_to(xkv.astype(mxu_dtype), (n_head, lk, d_model))

    q = jnp.einsum('hld,hdk->hlk', xq_m, wq_ref[...].astype(mxu_dtype),
                   preferred_element_type=jnp.float32) + bq_ref[...]   # (H, tq, d_k)
    k = jnp.einsum('hld,hdk->hlk', xkv_m, wk_ref[...].astype(mxu_dtype),
                   preferred_element_type=jnp.float32) + bk_ref[...]   # (H, Lk, d_k)
    v = jnp.einsum('hld,hdk->hlk', xkv_m, wv_ref[...].astype(mxu_dtype),
                   preferred_element_type=jnp.float32) + bv_ref[...]   # (H, Lk, d_v)

    # Scaled dot-product attention, all heads at once; contraction on the last
    # dims of both operands (no explicit transpose of K).
    inv_temp = 1.0 / (d_k ** 0.5)
    scores = jnp.einsum('hqd,hkd->hqk', q.astype(mxu_dtype), k.astype(mxu_dtype),
                        preferred_element_type=jnp.float32) * inv_temp
    scores = scores - jnp.max(scores, axis=-1, keepdims=True)
    e = jnp.exp(scores)
    attn = e * pl.reciprocal(jnp.sum(e, axis=-1, keepdims=True), approx=True)

    head_out = jnp.einsum('hqk,hkd->hqd', attn.astype(mxu_dtype),
                          v.astype(mxu_dtype),
                          preferred_element_type=jnp.float32)          # (H, tq, d_v)

    # fc(concat_heads): one batched dot_general + sum over the small head axis
    # (concat @ Wfc == sum_h head_h @ Wfc[h]); then residual + LayerNorm.
    y_h = jnp.einsum('hqd,hde->hqe', head_out.astype(mxu_dtype),
                     wfc_ref[...].astype(mxu_dtype),
                     preferred_element_type=jnp.float32)               # (H, tq, D)
    y = jnp.sum(y_h, axis=0) + bfc_ref[...] + xq
    y = _layer_norm(y, g1_ref[...], be1_ref[...], eps)

    # Position-wise feed-forward: Linear -> ReLU -> Linear, residual + LayerNorm.
    h = jnp.dot(y.astype(mxu_dtype), w1_ref[...].astype(mxu_dtype),
                preferred_element_type=jnp.float32) + b1_ref[...]
    h = jnp.maximum(h, 0.0)
    o = jnp.dot(h.astype(mxu_dtype), w2_ref[...].astype(mxu_dtype),
                preferred_element_type=jnp.float32) + b2_ref[...]
    o = _layer_norm(o + y, g2_ref[...], be2_ref[...], eps)

    out_ref[0] = o.astype(out_ref.dtype)
    if return_attn:
        attn_ref[0] = attn.astype(attn_ref.dtype)


def fft_block(x, params, *, n_head, d_k, d_v, eps=1e-5, q_block=None,
              mxu_dtype=jnp.bfloat16, return_attn=True):
    """Fused FFTBlock forward (eval mode, mask=None).

    Returns (enc_output, attn) like the PyTorch module -- attn has shape
    (n_head * sz_b, len_q, len_k) with flat index h * sz_b + b -- or just
    enc_output if return_attn=False (skips the attention HBM writeback).
    """
    sz_b, seq_len, d_model = x.shape
    H = n_head

    # Query tile: a multiple of 8 (sublane) that divides seq_len, else full length.
    if q_block is None or seq_len % q_block != 0:
        q_block = seq_len
        for cand in (256, 128, 64, 32, 16, 8):
            if seq_len % cand == 0:
                q_block = cand
                break

    # Pre-split weights per head (one-time XLA reshapes outside the kernel) so the
    # kernel never slices lanes or reshapes/transposes minor dims.
    wq = params["wq"].reshape(d_model, H, d_k).transpose(1, 0, 2)    # (H, D, d_k)
    wk = params["wk"].reshape(d_model, H, d_k).transpose(1, 0, 2)
    wv = params["wv"].reshape(d_model, H, d_v).transpose(1, 0, 2)    # (H, D, d_v)
    bq = params["bq"].reshape(H, 1, d_k)
    bk = params["bk"].reshape(H, 1, d_k)
    bv = params["bv"].reshape(H, 1, d_v)
    wfc = params["wfc"].reshape(H, d_v, d_model)                     # (H, d_v, D)
    bfc = params["bfc"].reshape(1, d_model)
    g1 = params["gamma1"].reshape(1, d_model)
    be1 = params["beta1"].reshape(1, d_model)
    w1 = params["w1"]
    b1 = params["b1"].reshape(1, -1)
    w2 = params["w2"]
    b2 = params["b2"].reshape(1, d_model)
    g2 = params["gamma2"].reshape(1, d_model)
    be2 = params["beta2"].reshape(1, d_model)

    weights = (wq, bq, wk, bk, wv, bv, wfc, bfc, g1, be1,
               w1, b1, w2, b2, g2, be2)

    def _full(a):
        nd = a.ndim
        return pl.BlockSpec(a.shape, lambda b, qi: (0,) * nd)

    in_specs = [
        pl.BlockSpec((1, q_block, d_model), lambda b, qi: (b, qi, 0)),   # q rows
        pl.BlockSpec((1, seq_len, d_model), lambda b, qi: (b, 0, 0)),    # full seq for K/V
    ] + [_full(w) for w in weights]

    out_shape = [jax.ShapeDtypeStruct((sz_b, seq_len, d_model), jnp.float32)]
    out_specs = [pl.BlockSpec((1, q_block, d_model), lambda b, qi: (b, qi, 0))]
    if return_attn:
        out_shape.append(
            jax.ShapeDtypeStruct((sz_b, H, seq_len, seq_len), jnp.float32))
        out_specs.append(
            pl.BlockSpec((1, H, q_block, seq_len), lambda b, qi: (b, 0, qi, 0)))

    kernel = functools.partial(
        _fft_block_kernel, n_head=n_head, d_k=d_k, eps=eps,
        mxu_dtype=mxu_dtype, return_attn=return_attn)

    results = pl.pallas_call(
        kernel,
        out_shape=tuple(out_shape),
        grid_spec=pltpu.PrefetchScalarGridSpec(
            num_scalar_prefetch=0,
            grid=(sz_b, seq_len // q_block),
            in_specs=in_specs,
            out_specs=tuple(out_specs),
        ),
        compiler_params=pltpu.CompilerParams(
            dimension_semantics=("parallel", "parallel")),
    )(x, x, *weights)

    if not return_attn:
        return results[0]
    out, attn = results
    # PyTorch layout: (n_head * sz_b, len_q, len_k) with flat index h * sz_b + b.
    attn = jnp.transpose(attn, (1, 0, 2, 3)).reshape(H * sz_b, seq_len, seq_len)
    return out, attn


def fft_block_reference(x, p, *, n_head, d_k, d_v, eps=1e-5):
    """Pure-JAX f32 reference matching the PyTorch FFTBlock forward (eval mode)."""
    sz_b, L, _ = x.shape
    H = n_head

    def ln(t, g, b):
        m = jnp.mean(t, axis=-1, keepdims=True)
        var = jnp.mean(jnp.square(t - m), axis=-1, keepdims=True)
        return (t - m) * jax.lax.rsqrt(var + eps) * g + b

    q = (x @ p["wq"] + p["bq"]).reshape(sz_b, L, H, d_k)
    k = (x @ p["wk"] + p["bk"]).reshape(sz_b, L, H, d_k)
    v = (x @ p["wv"] + p["bv"]).reshape(sz_b, L, H, d_v)
    scores = jnp.einsum("bqhd,bkhd->bhqk", q, k) / (d_k ** 0.5)
    attn = jax.nn.softmax(scores, axis=-1)
    heads = jnp.einsum("bhqk,bkhd->bqhd", attn, v).reshape(sz_b, L, H * d_v)
    y = ln(heads @ p["wfc"] + p["bfc"] + x, p["gamma1"], p["beta1"])
    h = jax.nn.relu(y @ p["w1"] + p["b1"])
    out = ln(h @ p["w2"] + p["b2"] + y, p["gamma2"], p["beta2"])
    attn_out = jnp.transpose(attn, (1, 0, 2, 3)).reshape(H * sz_b, L, L)
    return out, attn_out


def make_params(key, d_model, n_head, d_k, d_v, d_inner):
    ks = jax.random.split(key, 12)
    s = 0.1
    return {
        "wq": s * jax.random.normal(ks[0], (d_model, n_head * d_k), jnp.float32),
        "bq": s * jax.random.normal(ks[1], (n_head * d_k,), jnp.float32),
        "wk": s * jax.random.normal(ks[2], (d_model, n_head * d_k), jnp.float32),
        "bk": s * jax.random.normal(ks[3], (n_head * d_k,), jnp.float32),
        "wv": s * jax.random.normal(ks[4], (d_model, n_head * d_v), jnp.float32),
        "bv": s * jax.random.normal(ks[5], (n_head * d_v,), jnp.float32),
        "wfc": s * jax.random.normal(ks[6], (n_head * d_v, d_model), jnp.float32),
        "bfc": s * jax.random.normal(ks[7], (d_model,), jnp.float32),
        "gamma1": jnp.ones((d_model,), jnp.float32),
        "beta1": jnp.zeros((d_model,), jnp.float32),
        "w1": s * jax.random.normal(ks[8], (d_model, d_inner), jnp.float32),
        "b1": s * jax.random.normal(ks[9], (d_inner,), jnp.float32),
        "w2": s * jax.random.normal(ks[10], (d_inner, d_model), jnp.float32),
        "b2": s * jax.random.normal(ks[11], (d_model,), jnp.float32),
        "gamma2": jnp.ones((d_model,), jnp.float32),
        "beta2": jnp.zeros((d_model,), jnp.float32),
    }


if __name__ == "__main__":
    n_head, d_model, d_k, d_v, d_inner = 4, 32, 8, 8, 64
    sz_b, seq_len = 2, 8

    key = jax.random.PRNGKey(0)
    kx, kp = jax.random.split(key)
    x = jax.random.normal(kx, (sz_b, seq_len, d_model), jnp.float32)
    params = make_params(kp, d_model, n_head, d_k, d_v, d_inner)

    out, attn = fft_block(x, params, n_head=n_head, d_k=d_k, d_v=d_v)
    jax.block_until_ready((out, attn))
    assert out.shape == (sz_b, seq_len, d_model)
    assert attn.shape == (n_head * sz_b, seq_len, seq_len)

    ref_out, ref_attn = fft_block_reference(x, params, n_head=n_head, d_k=d_k, d_v=d_v)
    out_err = float(jnp.max(jnp.abs(out - ref_out)))
    attn_err = float(jnp.max(jnp.abs(attn - ref_attn)))
    # bf16 MXU operands with f32 accumulation -> small mixed-precision error.
    assert out_err < 1e-1, f"output mismatch: {out_err}"
    assert attn_err < 5e-2, f"attn mismatch: {attn_err}"

    # Optional-output path: skips the attention-probability HBM writeback.
    out_only = fft_block(x, params, n_head=n_head, d_k=d_k, d_v=d_v, return_attn=False)
    jax.block_until_ready(out_only)
    assert out_only.shape == (sz_b, seq_len, d_model)
    assert float(jnp.max(jnp.abs(out_only - ref_out))) < 1e-1

    print("KERNEL_OK")
</pallas_src>

<mosaic_0001>
module attributes {stable_mosaic.version = 11 : i64} {
  func.func @_fft_block_kernel(%arg0: i32, %arg1: i32, %arg2: memref<1x8x32xf32, #tpu.memory_space<vmem>>, %arg3: memref<1x8x32xf32, #tpu.memory_space<vmem>>, %arg4: memref<4x32x8xf32, #tpu.memory_space<vmem>>, %arg5: memref<4x1x8xf32, #tpu.memory_space<vmem>>, %arg6: memref<4x32x8xf32, #tpu.memory_space<vmem>>, %arg7: memref<4x1x8xf32, #tpu.memory_space<vmem>>, %arg8: memref<4x32x8xf32, #tpu.memory_space<vmem>>, %arg9: memref<4x1x8xf32, #tpu.memory_space<vmem>>, %arg10: memref<4x8x32xf32, #tpu.memory_space<vmem>>, %arg11: memref<1x32xf32, #tpu.memory_space<vmem>>, %arg12: memref<1x32xf32, #tpu.memory_space<vmem>>, %arg13: memref<1x32xf32, #tpu.memory_space<vmem>>, %arg14: memref<32x64xf32, #tpu.memory_space<vmem>>, %arg15: memref<1x64xf32, #tpu.memory_space<vmem>>, %arg16: memref<64x32xf32, #tpu.memory_space<vmem>>, %arg17: memref<1x32xf32, #tpu.memory_space<vmem>>, %arg18: memref<1x32xf32, #tpu.memory_space<vmem>>, %arg19: memref<1x32xf32, #tpu.memory_space<vmem>>, %arg20: memref<1x8x32xf32, #tpu.memory_space<vmem>>, %arg21: memref<1x4x8x8xf32, #tpu.memory_space<vmem>>) attributes {dimension_semantics = [#tpu.dimension_semantics<parallel>, #tpu.dimension_semantics<parallel>], iteration_bounds = array<i64: 2, 1>, scalar_prefetch = 0 : i64, scratch_operands = 0 : i64, tpu.core_type = #tpu.core_type<tc>, window_params = [{transform_indices = @transform_0, window_bounds = array<i64: 1, 8, 32>}, {transform_indices = @transform_1, window_bounds = array<i64: 1, 8, 32>}, {pipeline_mode = #tpu.pipeline_mode<synchronous>, transform_indices = @transform_2, window_bounds = array<i64: 4, 32, 8>}, {pipeline_mode = #tpu.pipeline_mode<synchronous>, transform_indices = @transform_3, window_bounds = array<i64: 4, 1, 8>}, {pipeline_mode = #tpu.pipeline_mode<synchronous>, transform_indices = @transform_4, window_bounds = array<i64: 4, 32, 8>}, {pipeline_mode = #tpu.pipeline_mode<synchronous>, transform_indices = @transform_5, window_bounds = array<i64: 4, 1, 8>}, {pipeline_mode = #tpu.pipeline_mode<synchronous>, transform_indices = @transform_6, window_bounds = array<i64: 4, 32, 8>}, {pipeline_mode = #tpu.pipeline_mode<synchronous>, transform_indices = @transform_7, window_bounds = array<i64: 4, 1, 8>}, {pipeline_mode = #tpu.pipeline_mode<synchronous>, transform_indices = @transform_8, window_bounds = array<i64: 4, 8, 32>}, {pipeline_mode = #tpu.pipeline_mode<synchronous>, transform_indices = @transform_9, window_bounds = array<i64: 1, 32>}, {pipeline_mode = #tpu.pipeline_mode<synchronous>, transform_indices = @transform_10, window_bounds = array<i64: 1, 32>}, {pipeline_mode = #tpu.pipeline_mode<synchronous>, transform_indices = @transform_11, window_bounds = array<i64: 1, 32>}, {pipeline_mode = #tpu.pipeline_mode<synchronous>, transform_indices = @transform_12, window_bounds = array<i64: 32, 64>}, {pipeline_mode = #tpu.pipeline_mode<synchronous>, transform_indices = @transform_13, window_bounds = array<i64: 1, 64>}, {pipeline_mode = #tpu.pipeline_mode<synchronous>, transform_indices = @transform_14, window_bounds = array<i64: 64, 32>}, {pipeline_mode = #tpu.pipeline_mode<synchronous>, transform_indices = @transform_15, window_bounds = array<i64: 1, 32>}, {pipeline_mode = #tpu.pipeline_mode<synchronous>, transform_indices = @transform_16, window_bounds = array<i64: 1, 32>}, {pipeline_mode = #tpu.pipeline_mode<synchronous>, transform_indices = @transform_17, window_bounds = array<i64: 1, 32>}, {transform_indices = @transform_18, window_bounds = array<i64: 1, 8, 32>}, {transform_indices = @transform_19, window_bounds = array<i64: 1, 4, 8, 8>}]} {
    %c0 = arith.constant 0 : index
    %c0_0 = arith.constant 0 : index
    %c0_1 = arith.constant 0 : index
    %0 = vector.load %arg2[%c0, %c0_0, %c0_1] : memref<1x8x32xf32, #tpu.memory_space<vmem>>, vector<1x8x32xf32>
    %1 = vector.shape_cast %0 : vector<1x8x32xf32> to vector<8x32xf32>
    %c0_2 = arith.constant 0 : index
    %c0_3 = arith.constant 0 : index
    %c0_4 = arith.constant 0 : index
    %2 = vector.load %arg3[%c0_2, %c0_3, %c0_4] : memref<1x8x32xf32, #tpu.memory_space<vmem>>, vector<1x8x32xf32>
    %3 = vector.shape_cast %2 : vector<1x8x32xf32> to vector<8x32xf32>
    %4 = arith.truncf %1 : vector<8x32xf32> to vector<8x32xbf16>
    %5 = vector.shape_cast %4 : vector<8x32xbf16> to vector<1x8x32xbf16>
    %6 = vector.broadcast %5 : vector<1x8x32xbf16> to vector<4x8x32xbf16>
    %7 = arith.truncf %3 : vector<8x32xf32> to vector<8x32xbf16>
    %8 = vector.shape_cast %7 : vector<8x32xbf16> to vector<1x8x32xbf16>
    %9 = vector.broadcast %8 : vector<1x8x32xbf16> to vector<4x8x32xbf16>
    %c0_5 = arith.constant 0 : index
    %c0_6 = arith.constant 0 : index
    %c0_7 = arith.constant 0 : index
    %10 = vector.load %arg4[%c0_5, %c0_6, %c0_7] : memref<4x32x8xf32, #tpu.memory_space<vmem>>, vector<4x32x8xf32>
    %11 = arith.truncf %10 : vector<4x32x8xf32> to vector<4x32x8xbf16>
    "tpu.trace_start"() <{level = 10 : i32, message = "hld,hdk->hlk"}> : () -> ()
    %cst = arith.constant dense<0.000000e+00> : vector<4x8x8xf32>
    %12 = tpu.matmul %6, %11, %cst {dimension_numbers = #tpu.dot_dimension_numbers<[2], [1], [1], [2], [0, 0, 0, 1, 1, 2], [0], [0]>} : vector<4x8x32xbf16>, vector<4x32x8xbf16>, vector<4x8x8xf32> -> vector<4x8x8xf32>
    "tpu.trace_stop"() : () -> ()
    %c0_8 = arith.constant 0 : index
    %c0_9 = arith.constant 0 : index
    %c0_10 = arith.constant 0 : index
    %13 = vector.load %arg5[%c0_8, %c0_9, %c0_10] : memref<4x1x8xf32, #tpu.memory_space<vmem>>, vector<4x1x8xf32>
    %14 = vector.broadcast %13 : vector<4x1x8xf32> to vector<4x8x8xf32>
    %15 = arith.addf %12, %14 : vector<4x8x8xf32>
    %c0_11 = arith.constant 0 : index
    %c0_12 = arith.constant 0 : index
    %c0_13 = arith.constant 0 : index
    %16 = vector.load %arg6[%c0_11, %c0_12, %c0_13] : memref<4x32x8xf32, #tpu.memory_space<vmem>>, vector<4x32x8xf32>
    %17 = arith.truncf %16 : vector<4x32x8xf32> to vector<4x32x8xbf16>
    "tpu.trace_start"() <{level = 10 : i32, message = "hld,hdk->hlk"}> : () -> ()
    %cst_14 = arith.constant dense<0.000000e+00> : vector<4x8x8xf32>
    %18 = tpu.matmul %9, %17, %cst_14 {dimension_numbers = #tpu.dot_dimension_numbers<[2], [1], [1], [2], [0, 0, 0, 1, 1, 2], [0], [0]>} : vector<4x8x32xbf16>, vector<4x32x8xbf16>, vector<4x8x8xf32> -> vector<4x8x8xf32>
    "tpu.trace_stop"() : () -> ()
    %c0_15 = arith.constant 0 : index
    %c0_16 = arith.constant 0 : index
    %c0_17 = arith.constant 0 : index
    %19 = vector.load %arg7[%c0_15, %c0_16, %c0_17] : memref<4x1x8xf32, #tpu.memory_space<vmem>>, vector<4x1x8xf32>
    %20 = vector.broadcast %19 : vector<4x1x8xf32> to vector<4x8x8xf32>
    %21 = arith.addf %18, %20 : vector<4x8x8xf32>
    %c0_18 = arith.constant 0 : index
    %c0_19 = arith.constant 0 : index
    %c0_20 = arith.constant 0 : index
    %22 = vector.load %arg8[%c0_18, %c0_19, %c0_20] : memref<4x32x8xf32, #tpu.memory_space<vmem>>, vector<4x32x8xf32>
    %23 = arith.truncf %22 : vector<4x32x8xf32> to vector<4x32x8xbf16>
    "tpu.trace_start"() <{level = 10 : i32, message = "hld,hdk->hlk"}> : () -> ()
    %cst_21 = arith.constant dense<0.000000e+00> : vector<4x8x8xf32>
    %24 = tpu.matmul %9, %23, %cst_21 {dimension_numbers = #tpu.dot_dimension_numbers<[2], [1], [1], [2], [0, 0, 0, 1, 1, 2], [0], [0]>} : vector<4x8x32xbf16>, vector<4x32x8xbf16>, vector<4x8x8xf32> -> vector<4x8x8xf32>
    "tpu.trace_stop"() : () -> ()
    %c0_22 = arith.constant 0 : index
    %c0_23 = arith.constant 0 : index
    %c0_24 = arith.constant 0 : index
    %25 = vector.load %arg9[%c0_22, %c0_23, %c0_24] : memref<4x1x8xf32, #tpu.memory_space<vmem>>, vector<4x1x8xf32>
    %26 = vector.broadcast %25 : vector<4x1x8xf32> to vector<4x8x8xf32>
    %27 = arith.addf %24, %26 : vector<4x8x8xf32>
    %28 = arith.truncf %15 : vector<4x8x8xf32> to vector<4x8x8xbf16>
    %29 = arith.truncf %21 : vector<4x8x8xf32> to vector<4x8x8xbf16>
    "tpu.trace_start"() <{level = 10 : i32, message = "hqd,hkd->hqk"}> : () -> ()
    %cst_25 = arith.constant dense<0.000000e+00> : vector<4x8x8xf32>
    %30 = tpu.matmul %28, %29, %cst_25 {dimension_numbers = #tpu.dot_dimension_numbers<[2], [2], [1], [1], [0, 0, 0, 1, 1, 1], [0], [0]>} : vector<4x8x8xbf16>, vector<4x8x8xbf16>, vector<4x8x8xf32> -> vector<4x8x8xf32>
    "tpu.trace_stop"() : () -> ()
    %cst_26 = arith.constant 0.353553385 : f32
    %31 = vector.broadcast %cst_26 : f32 to vector<4x8x8xf32>
    %32 = arith.mulf %30, %31 : vector<4x8x8xf32>
    %cst_27 = arith.constant dense<0xFF800000> : vector<4x8xf32>
    %33 = vector.multi_reduction <maximumf>, %32, %cst_27 [2] : vector<4x8x8xf32> to vector<4x8xf32>
    %34 = vector.shape_cast %33 : vector<4x8xf32> to vector<4x8x1xf32>
    %35 = vector.broadcast %34 : vector<4x8x1xf32> to vector<4x8x8xf32>
    %36 = arith.subf %32, %35 : vector<4x8x8xf32>
    %37 = math.exp %36 : vector<4x8x8xf32>
    %cst_28 = arith.constant dense<0.000000e+00> : vector<4x8xf32>
    %38 = vector.multi_reduction <add>, %37, %cst_28 [2] : vector<4x8x8xf32> to vector<4x8xf32>
    %39 = vector.shape_cast %38 : vector<4x8xf32> to vector<4x8x1xf32>
    %40 = tpu.reciprocal %39 {approx = true} : vector<4x8x1xf32> -> vector<4x8x1xf32>
    %41 = vector.broadcast %40 : vector<4x8x1xf32> to vector<4x8x8xf32>
    %42 = arith.mulf %37, %41 : vector<4x8x8xf32>
    %43 = arith.truncf %42 : vector<4x8x8xf32> to vector<4x8x8xbf16>
    %44 = arith.truncf %27 : vector<4x8x8xf32> to vector<4x8x8xbf16>
    "tpu.trace_start"() <{level = 10 : i32, message = "hqk,hkd->hqd"}> : () -> ()
    %cst_29 = arith.constant dense<0.000000e+00> : vector<4x8x8xf32>
    %45 = tpu.matmul %43, %44, %cst_29 {dimension_numbers = #tpu.dot_dimension_numbers<[2], [1], [1], [2], [0, 0, 0, 1, 1, 2], [0], [0]>} : vector<4x8x8xbf16>, vector<4x8x8xbf16>, vector<4x8x8xf32> -> vector<4x8x8xf32>
    "tpu.trace_stop"() : () -> ()
    %46 = arith.truncf %45 : vector<4x8x8xf32> to vector<4x8x8xbf16>
    %c0_30 = arith.constant 0 : index
    %c0_31 = arith.constant 0 : index
    %c0_32 = arith.constant 0 : index
    %47 = vector.load %arg10[%c0_30, %c0_31, %c0_32] : memref<4x8x32xf32, #tpu.memory_space<vmem>>, vector<4x8x32xf32>
    %48 = arith.truncf %47 : vector<4x8x32xf32> to vector<4x8x32xbf16>
    "tpu.trace_start"() <{level = 10 : i32, message = "hqd,hde->hqe"}> : () -> ()
    %cst_33 = arith.constant dense<0.000000e+00> : vector<4x8x32xf32>
    %49 = tpu.matmul %46, %48, %cst_33 {dimension_numbers = #tpu.dot_dimension_numbers<[2], [1], [1], [2], [0, 0, 0, 1, 1, 2], [0], [0]>} : vector<4x8x8xbf16>, vector<4x8x32xbf16>, vector<4x8x32xf32> -> vector<4x8x32xf32>
    "tpu.trace_stop"() : () -> ()
    %cst_34 = arith.constant dense<0.000000e+00> : vector<8x32xf32>
    %50 = vector.multi_reduction <add>, %49, %cst_34 [0] : vector<4x8x32xf32> to vector<8x32xf32>
    %c0_35 = arith.constant 0 : index
    %c0_36 = arith.constant 0 : index
    %51 = vector.load %arg11[%c0_35, %c0_36] : memref<1x32xf32, #tpu.memory_space<vmem>>, vector<1x32xf32>
    %52 = vector.broadcast %51 : vector<1x32xf32> to vector<8x32xf32>
    %53 = arith.addf %50, %52 : vector<8x32xf32>
    %54 = arith.addf %53, %1 : vector<8x32xf32>
    %c0_37 = arith.constant 0 : index
    %c0_38 = arith.constant 0 : index
    %55 = vector.load %arg12[%c0_37, %c0_38] : memref<1x32xf32, #tpu.memory_space<vmem>>, vector<1x32xf32>
    %c0_39 = arith.constant 0 : index
    %c0_40 = arith.constant 0 : index
    %56 = vector.load %arg13[%c0_39, %c0_40] : memref<1x32xf32, #tpu.memory_space<vmem>>, vector<1x32xf32>
    %cst_41 = arith.constant dense<0.000000e+00> : vector<8xf32>
    %57 = vector.multi_reduction <add>, %54, %cst_41 [1] : vector<8x32xf32> to vector<8xf32>
    %58 = vector.shape_cast %57 : vector<8xf32> to vector<8x1xf32>
    %cst_42 = arith.constant 3.200000e+01 : f32
    %59 = vector.broadcast %cst_42 : f32 to vector<8x1xf32>
    %60 = arith.divf %58, %59 : vector<8x1xf32>
    %61 = vector.broadcast %60 : vector<8x1xf32> to vector<8x32xf32>
    %62 = arith.subf %54, %61 : vector<8x32xf32>
    %63 = arith.mulf %62, %62 : vector<8x32xf32>
    %cst_43 = arith.constant dense<0.000000e+00> : vector<8xf32>
    %64 = vector.multi_reduction <add>, %63, %cst_43 [1] : vector<8x32xf32> to vector<8xf32>
    %65 = vector.shape_cast %64 : vector<8xf32> to vector<8x1xf32>
    %cst_44 = arith.constant 3.200000e+01 : f32
    %66 = vector.broadcast %cst_44 : f32 to vector<8x1xf32>
    %67 = arith.divf %65, %66 : vector<8x1xf32>
    %68 = vector.broadcast %60 : vector<8x1xf32> to vector<8x32xf32>
    %69 = arith.subf %54, %68 : vector<8x32xf32>
    %cst_45 = arith.constant 9.99999974E-6 : f32
    %70 = vector.broadcast %cst_45 : f32 to vector<8x1xf32>
    %71 = arith.addf %67, %70 : vector<8x1xf32>
    %72 = math.rsqrt %71 : vector<8x1xf32>
    %73 = vector.broadcast %72 : vector<8x1xf32> to vector<8x32xf32>
    %74 = arith.mulf %69, %73 : vector<8x32xf32>
    %75 = vector.broadcast %55 : vector<1x32xf32> to vector<8x32xf32>
    %76 = arith.mulf %74, %75 : vector<8x32xf32>
    %77 = vector.broadcast %56 : vector<1x32xf32> to vector<8x32xf32>
    %78 = arith.addf %76, %77 : vector<8x32xf32>
    %79 = arith.truncf %78 : vector<8x32xf32> to vector<8x32xbf16>
    %c0_46 = arith.constant 0 : index
    %c0_47 = arith.constant 0 : index
    %80 = vector.load %arg14[%c0_46, %c0_47] : memref<32x64xf32, #tpu.memory_space<vmem>>, vector<32x64xf32>
    %81 = arith.truncf %80 : vector<32x64xf32> to vector<32x64xbf16>
    %cst_48 = arith.constant dense<0.000000e+00> : vector<8x64xf32>
    %82 = tpu.matmul %79, %81, %cst_48 {dimension_numbers = #tpu.dot_dimension_numbers<[1], [0], [0], [1], [0, 0, 1, 1], [], []>} : vector<8x32xbf16>, vector<32x64xbf16>, vector<8x64xf32> -> vector<8x64xf32>
    %c0_49 = arith.constant 0 : index
    %c0_50 = arith.constant 0 : index
    %83 = vector.load %arg15[%c0_49, %c0_50] : memref<1x64xf32, #tpu.memory_space<vmem>>, vector<1x64xf32>
    %84 = vector.broadcast %83 : vector<1x64xf32> to vector<8x64xf32>
    %85 = arith.addf %82, %84 : vector<8x64xf32>
    %cst_51 = arith.constant 0.000000e+00 : f32
    %86 = vector.broadcast %cst_51 : f32 to vector<8x64xf32>
    %87 = arith.maximumf %85, %86 : vector<8x64xf32>
    %88 = arith.truncf %87 : vector<8x64xf32> to vector<8x64xbf16>
    %c0_52 = arith.constant 0 : index
    %c0_53 = arith.constant 0 : index
    %89 = vector.load %arg16[%c0_52, %c0_53] : memref<64x32xf32, #tpu.memory_space<vmem>>, vector<64x32xf32>
    %90 = arith.truncf %89 : vector<64x32xf32> to vector<64x32xbf16>
    %cst_54 = arith.constant dense<0.000000e+00> : vector<8x32xf32>
    %91 = tpu.matmul %88, %90, %cst_54 {dimension_numbers = #tpu.dot_dimension_numbers<[1], [0], [0], [1], [0, 0, 1, 1], [], []>} : vector<8x64xbf16>, vector<64x32xbf16>, vector<8x32xf32> -> vector<8x32xf32>
    %c0_55 = arith.constant 0 : index
    %c0_56 = arith.constant 0 : index
    %92 = vector.load %arg17[%c0_55, %c0_56] : memref<1x32xf32, #tpu.memory_space<vmem>>, vector<1x32xf32>
    %93 = vector.broadcast %92 : vector<1x32xf32> to vector<8x32xf32>
    %94 = arith.addf %91, %93 : vector<8x32xf32>
    %95 = arith.addf %94, %78 : vector<8x32xf32>
    %c0_57 = arith.constant 0 : index
    %c0_58 = arith.constant 0 : index
    %96 = vector.load %arg18[%c0_57, %c0_58] : memref<1x32xf32, #tpu.memory_space<vmem>>, vector<1x32xf32>
    %c0_59 = arith.constant 0 : index
    %c0_60 = arith.constant 0 : index
    %97 = vector.load %arg19[%c0_59, %c0_60] : memref<1x32xf32, #tpu.memory_space<vmem>>, vector<1x32xf32>
    %cst_61 = arith.constant dense<0.000000e+00> : vector<8xf32>
    %98 = vector.multi_reduction <add>, %95, %cst_61 [1] : vector<8x32xf32> to vector<8xf32>
    %99 = vector.shape_cast %98 : vector<8xf32> to vector<8x1xf32>
    %cst_62 = arith.constant 3.200000e+01 : f32
    %100 = vector.broadcast %cst_62 : f32 to vector<8x1xf32>
    %101 = arith.divf %99, %100 : vector<8x1xf32>
    %102 = vector.broadcast %101 : vector<8x1xf32> to vector<8x32xf32>
    %103 = arith.subf %95, %102 : vector<8x32xf32>
    %104 = arith.mulf %103, %103 : vector<8x32xf32>
    %cst_63 = arith.constant dense<0.000000e+00> : vector<8xf32>
    %105 = vector.multi_reduction <add>, %104, %cst_63 [1] : vector<8x32xf32> to vector<8xf32>
    %106 = vector.shape_cast %105 : vector<8xf32> to vector<8x1xf32>
    %cst_64 = arith.constant 3.200000e+01 : f32
    %107 = vector.broadcast %cst_64 : f32 to vector<8x1xf32>
    %108 = arith.divf %106, %107 : vector<8x1xf32>
    %109 = vector.broadcast %101 : vector<8x1xf32> to vector<8x32xf32>
    %110 = arith.subf %95, %109 : vector<8x32xf32>
    %cst_65 = arith.constant 9.99999974E-6 : f32
    %111 = vector.broadcast %cst_65 : f32 to vector<8x1xf32>
    %112 = arith.addf %108, %111 : vector<8x1xf32>
    %113 = math.rsqrt %112 : vector<8x1xf32>
    %114 = vector.broadcast %113 : vector<8x1xf32> to vector<8x32xf32>
    %115 = arith.mulf %110, %114 : vector<8x32xf32>
    %116 = vector.broadcast %96 : vector<1x32xf32> to vector<8x32xf32>
    %117 = arith.mulf %115, %116 : vector<8x32xf32>
    %118 = vector.broadcast %97 : vector<1x32xf32> to vector<8x32xf32>
    %119 = arith.addf %117, %118 : vector<8x32xf32>
    %c0_66 = arith.constant 0 : index
    %c0_67 = arith.constant 0 : index
    %c0_68 = arith.constant 0 : index
    %120 = vector.load %arg20[%c0_66, %c0_67, %c0_68] : memref<1x8x32xf32, #tpu.memory_space<vmem>>, vector<1x8x32xf32>
    %121 = vector.shape_cast %120 : vector<1x8x32xf32> to vector<8x32xf32>
    %122 = vector.shape_cast %119 : vector<8x32xf32> to vector<1x8x32xf32>
    tpu.vector_store %arg20[%c0_66, %c0_67, %c0_68], %122 {strides = array<i32>} : memref<1x8x32xf32, #tpu.memory_space<vmem>>, vector<1x8x32xf32>,
    %c0_69 = arith.constant 0 : index
    %c0_70 = arith.constant 0 : index
    %c0_71 = arith.constant 0 : index
    %c0_72 = arith.constant 0 : index
    %123 = vector.load %arg21[%c0_69, %c0_70, %c0_71, %c0_72] : memref<1x4x8x8xf32, #tpu.memory_space<vmem>>, vector<1x4x8x8xf32>
    %124 = vector.shape_cast %123 : vector<1x4x8x8xf32> to vector<4x8x8xf32>
    %125 = vector.shape_cast %42 : vector<4x8x8xf32> to vector<1x4x8x8xf32>
    tpu.vector_store %arg21[%c0_69, %c0_70, %c0_71, %c0_72], %125 {strides = array<i32>} : memref<1x4x8x8xf32, #tpu.memory_space<vmem>>, vector<1x4x8x8xf32>,
    return
  }
  func.func @transform_0(%arg0: i32, %arg1: i32) -> (i32, i32, i32) {
    %c0_i32 = arith.constant 0 : i32
    %c0_i32_0 = arith.constant 0 : i32
    return %arg0, %arg1, %c0_i32 : i32, i32, i32
  }
  func.func @transform_1(%arg0: i32, %arg1: i32) -> (i32, i32, i32) {
    %c0_i32 = arith.constant 0 : i32
    %c0_i32_0 = arith.constant 0 : i32
    %c0_i32_1 = arith.constant 0 : i32
    return %arg0, %c0_i32, %c0_i32_0 : i32, i32, i32
  }
  func.func @transform_2(%arg0: i32, %arg1: i32) -> (i32, i32, i32) {
    %c0_i32 = arith.constant 0 : i32
    %c0_i32_0 = arith.constant 0 : i32
    %c0_i32_1 = arith.constant 0 : i32
    %c0_i32_2 = arith.constant 0 : i32
    return %c0_i32, %c0_i32_0, %c0_i32_1 : i32, i32, i32
  }
  func.func @transform_3(%arg0: i32, %arg1: i32) -> (i32, i32, i32) {
    %c0_i32 = arith.constant 0 : i32
    %c0_i32_0 = arith.constant 0 : i32
    %c0_i32_1 = arith.constant 0 : i32
    %c0_i32_2 = arith.constant 0 : i32
    return %c0_i32, %c0_i32_0, %c0_i32_1 : i32, i32, i32
  }
  func.func @transform_4(%arg0: i32, %arg1: i32) -> (i32, i32, i32) {
    %c0_i32 = arith.constant 0 : i32
    %c0_i32_0 = arith.constant 0 : i32
    %c0_i32_1 = arith.constant 0 : i32
    %c0_i32_2 = arith.constant 0 : i32
    return %c0_i32, %c0_i32_0, %c0_i32_1 : i32, i32, i32
  }
  func.func @transform_5(%arg0: i32, %arg1: i32) -> (i32, i32, i32) {
    %c0_i32 = arith.constant 0 : i32
    %c0_i32_0 = arith.constant 0 : i32
    %c0_i32_1 = arith.constant 0 : i32
    %c0_i32_2 = arith.constant 0 : i32
    return %c0_i32, %c0_i32_0, %c0_i32_1 : i32, i32, i32
  }
  func.func @transform_6(%arg0: i32, %arg1: i32) -> (i32, i32, i32) {
    %c0_i32 = arith.constant 0 : i32
    %c0_i32_0 = arith.constant 0 : i32
    %c0_i32_1 = arith.constant 0 : i32
    %c0_i32_2 = arith.constant 0 : i32
    return %c0_i32, %c0_i32_0, %c0_i32_1 : i32, i32, i32
  }
  func.func @transform_7(%arg0: i32, %arg1: i32) -> (i32, i32, i32) {
    %c0_i32 = arith.constant 0 : i32
    %c0_i32_0 = arith.constant 0 : i32
    %c0_i32_1 = arith.constant 0 : i32
    %c0_i32_2 = arith.constant 0 : i32
    return %c0_i32, %c0_i32_0, %c0_i32_1 : i32, i32, i32
  }
  func.func @transform_8(%arg0: i32, %arg1: i32) -> (i32, i32, i32) {
    %c0_i32 = arith.constant 0 : i32
    %c0_i32_0 = arith.constant 0 : i32
    %c0_i32_1 = arith.constant 0 : i32
    %c0_i32_2 = arith.constant 0 : i32
    return %c0_i32, %c0_i32_0, %c0_i32_1 : i32, i32, i32
  }
  func.func @transform_9(%arg0: i32, %arg1: i32) -> (i32, i32) {
    %c0_i32 = arith.constant 0 : i32
    %c0_i32_0 = arith.constant 0 : i32
    %c0_i32_1 = arith.constant 0 : i32
    return %c0_i32, %c0_i32_0 : i32, i32
  }
  func.func @transform_10(%arg0: i32, %arg1: i32) -> (i32, i32) {
    %c0_i32 = arith.constant 0 : i32
    %c0_i32_0 = arith.constant 0 : i32
    %c0_i32_1 = arith.constant 0 : i32
    return %c0_i32, %c0_i32_0 : i32, i32
  }
  func.func @transform_11(%arg0: i32, %arg1: i32) -> (i32, i32) {
    %c0_i32 = arith.constant 0 : i32
    %c0_i32_0 = arith.constant 0 : i32
    %c0_i32_1 = arith.constant 0 : i32
    return %c0_i32, %c0_i32_0 : i32, i32
  }
  func.func @transform_12(%arg0: i32, %arg1: i32) -> (i32, i32) {
    %c0_i32 = arith.constant 0 : i32
    %c0_i32_0 = arith.constant 0 : i32
    %c0_i32_1 = arith.constant 0 : i32
    return %c0_i32, %c0_i32_0 : i32, i32
  }
  func.func @transform_13(%arg0: i32, %arg1: i32) -> (i32, i32) {
    %c0_i32 = arith.constant 0 : i32
    %c0_i32_0 = arith.constant 0 : i32
    %c0_i32_1 = arith.constant 0 : i32
    return %c0_i32, %c0_i32_0 : i32, i32
  }
  func.func @transform_14(%arg0: i32, %arg1: i32) -> (i32, i32) {
    %c0_i32 = arith.constant 0 : i32
    %c0_i32_0 = arith.constant 0 : i32
    %c0_i32_1 = arith.constant 0 : i32
    return %c0_i32, %c0_i32_0 : i32, i32
  }
  func.func @transform_15(%arg0: i32, %arg1: i32) -> (i32, i32) {
    %c0_i32 = arith.constant 0 : i32
    %c0_i32_0 = arith.constant 0 : i32
    %c0_i32_1 = arith.constant 0 : i32
    return %c0_i32, %c0_i32_0 : i32, i32
  }
  func.func @transform_16(%arg0: i32, %arg1: i32) -> (i32, i32) {
    %c0_i32 = arith.constant 0 : i32
    %c0_i32_0 = arith.constant 0 : i32
    %c0_i32_1 = arith.constant 0 : i32
    return %c0_i32, %c0_i32_0 : i32, i32
  }
  func.func @transform_17(%arg0: i32, %arg1: i32) -> (i32, i32) {
    %c0_i32 = arith.constant 0 : i32
    %c0_i32_0 = arith.constant 0 : i32
    %c0_i32_1 = arith.constant 0 : i32
    return %c0_i32, %c0_i32_0 : i32, i32
  }
  func.func @transform_18(%arg0: i32, %arg1: i32) -> (i32, i32, i32) {
    %c0_i32 = arith.constant 0 : i32
    %c0_i32_0 = arith.constant 0 : i32
    return %arg0, %arg1, %c0_i32 : i32, i32, i32
  }
  func.func @transform_19(%arg0: i32, %arg1: i32) -> (i32, i32, i32, i32) {
    %c0_i32 = arith.constant 0 : i32
    %c0_i32_0 = arith.constant 0 : i32
    %c0_i32_1 = arith.constant 0 : i32
    return %arg0, %c0_i32, %arg1, %c0_i32_0 : i32, i32, i32, i32
  }
}

</mosaic_0001>

<llo_original>
// kernel: tpu_custom_call.1
$region0: #{tpu_custom_call.1}
  #allocation0 [shape = 'u32[]', space=smem, size = 0x4, offset = 0x4, fixed_abs, tag = 'smem constant byte address 0x4 - core index']
  #allocation1 [shape = 'u32[144,128]{1,0:T(1,128)}', space=vmem, size = 0x12000, scoped, tag = 'internal scratch']
  %s0 = inlined_call_operand.vmem [shape: f32[2,8,32], index: 0, kind: input, shape index: {}]
  %s1 = inlined_call_operand.vmem [shape: f32[2,8,32], index: 1, kind: input, shape index: {}]
  %s2 = inlined_call_operand.vmem [shape: f32[4,32,8], index: 2, kind: input, shape index: {}]
  %s3 = inlined_call_operand.vmem [shape: f32[4,1,8], index: 3, kind: input, shape index: {}]
  %s4 = inlined_call_operand.vmem [shape: f32[4,32,8], index: 4, kind: input, shape index: {}]
  %s5 = inlined_call_operand.vmem [shape: f32[4,1,8], index: 5, kind: input, shape index: {}]
  %s6 = inlined_call_operand.vmem [shape: f32[4,32,8], index: 6, kind: input, shape index: {}]
  %s7 = inlined_call_operand.vmem [shape: f32[4,1,8], index: 7, kind: input, shape index: {}]
  %s8 = inlined_call_operand.vmem [shape: f32[4,8,32], index: 8, kind: input, shape index: {}]
  %s9 = inlined_call_operand.vmem [shape: f32[1,32], index: 9, kind: input, shape index: {}]
  %s10 = inlined_call_operand.vmem [shape: f32[1,32], index: 10, kind: input, shape index: {}]
  %s11 = inlined_call_operand.vmem [shape: f32[1,32], index: 11, kind: input, shape index: {}]
  %s12 = inlined_call_operand.vmem [shape: f32[32,64], index: 12, kind: input, shape index: {}]
  %s13 = inlined_call_operand.vmem [shape: f32[1,64], index: 13, kind: input, shape index: {}]
  %s14 = inlined_call_operand.vmem [shape: f32[64,32], index: 14, kind: input, shape index: {}]
  %s15 = inlined_call_operand.vmem [shape: f32[1,32], index: 15, kind: input, shape index: {}]
  %s16 = inlined_call_operand.vmem [shape: f32[1,32], index: 16, kind: input, shape index: {}]
  %s17 = inlined_call_operand.vmem [shape: f32[1,32], index: 17, kind: input, shape index: {}]
  %s18 = inlined_call_operand.hbm [shape: f32[2,8,32], index: 18, kind: output, shape index: {0}]
  %s19 = inlined_call_operand.hbm [shape: f32[2,4,8,8], index: 19, kind: output, shape index: {1}]
  %20 = xla_tuple %s18, %s19
  %s21 = sld [smem:[#allocation0]]
  $region113: #{tpu_custom_call.1} parent=0
    _
  %s23 = ssub.s32 1, %s21
  %s24 = scalar_select 0, %s23, %s21
  $region1: #{tpu_custom_call.1} parent=0
    #allocation2 [shape = 'u8[8192]{0}', space=vmem, size = 0x2000, scoped, tag = 'output window, operand 0']
    #allocation3 [shape = 's32[2]{0}', space=sflag, size = 0x8, scoped, tag = 'scoped memory for tpu_custom_call.1']
    #allocation4 [shape = 'u8[32768]{0}', space=vmem, size = 0x8000, scoped, tag = 'output window, operand 1']
    #allocation5 [shape = 's32[2]{0}', space=sflag, size = 0x8, scoped, tag = 'scoped memory for tpu_custom_call.1']
    %25 = vsyncpa [#allocation3], 0
    %s26 = scalar_lea.sflag [#allocation3], 1
    %27 = vsyncpa %s26, 0
    %28 = vsyncpa [#allocation5], 0
    %s29 = scalar_lea.sflag [#allocation5], 1
    %30 = vsyncpa %s29, 0
    loop: start=0, step=1, limit=4
    $region2: #{tpu_custom_call.1} parent=1 // loop_pre_header
      _
    $region3: #{tpu_custom_call.1} parent=1 // loop_header
      %s32 = sphi 0, %s36
      %p33 = scmp.ge.s32.totalorder %s32, 4
      %s39 = sphi 0, %s51
      %s40 = sphi 0, %s47
      %s41 = sphi 0, %s39
      %s42 = sphi 0, %s40
      %s43 = sphi 0, %s41
      %s44 = sphi 0, %s42
      %s56 = sphi 0, %s58
      %s59 = sphi 0, %s56
      %s60 = sphi 0, %s59
      %s76 = sphi 0, %s60
      %s82 = sphi 0, %s84
      %s85 = sphi 0, %s82
      %s86 = sphi 0, %s85
      %s102 = sphi 0, %s86
      %s106 = sphi 0, %s106
      %s108 = sphi 0, %s106
      %s109 = sphi 0, %s108
      %s123 = sphi 0, %s109
      %s127 = sphi 0, %s127
      %s129 = sphi 0, %s127
      %s130 = sphi 0, %s129
      %s144 = sphi 0, %s130
      %s148 = sphi 0, %s148
      %s150 = sphi 0, %s148
      %s151 = sphi 0, %s150
      %s165 = sphi 0, %s151
      %s169 = sphi 0, %s169
      %s171 = sphi 0, %s169
      %s172 = sphi 0, %s171
      %s186 = sphi 0, %s172
      %s190 = sphi 0, %s190
      %s192 = sphi 0, %s190
      %s193 = sphi 0, %s192
      %s207 = sphi 0, %s193
      %s211 = sphi 0, %s211
      %s213 = sphi 0, %s211
      %s214 = sphi 0, %s213
      %s228 = sphi 0, %s214
      %s232 = sphi 0, %s232
      %s234 = sphi 0, %s232
      %s235 = sphi 0, %s234
      %s249 = sphi 0, %s235
      %s253 = sphi 0, %s253
      %s255 = sphi 0, %s253
      %s256 = sphi 0, %s255
      %s270 = sphi 0, %s256
      %s274 = sphi 0, %s274
      %s276 = sphi 0, %s274
      %s277 = sphi 0, %s276
      %s291 = sphi 0, %s277
      %s295 = sphi 0, %s295
      %s297 = sphi 0, %s295
      %s298 = sphi 0, %s297
      %s312 = sphi 0, %s298
      %s316 = sphi 0, %s316
      %s318 = sphi 0, %s316
      %s319 = sphi 0, %s318
      %s333 = sphi 0, %s319
      %s337 = sphi 0, %s337
      %s339 = sphi 0, %s337
      %s340 = sphi 0, %s339
      %s354 = sphi 0, %s340
      %s358 = sphi 0, %s358
      %s360 = sphi 0, %s358
      %s361 = sphi 0, %s360
      %s375 = sphi 0, %s361
      %s379 = sphi 0, %s379
      %s381 = sphi 0, %s379
      %s382 = sphi 0, %s381
      %s396 = sphi 0, %s382
      %s400 = sphi 0, %s400
      %s402 = sphi 0, %s400
      %s403 = sphi 0, %s402
      %s417 = sphi 0, %s403
      %s421 = sphi 0, %s421
      %s423 = sphi 0, %s421
      %s424 = sphi 0, %s423
      %s438 = sphi 0, %s424
      %s446 = sphi 0, %s448
      %s449 = sphi 0, %s446
      %s450 = sphi 0, %s449
      %s466 = sphi 0, %s450
      %s474 = sphi 0, %s476
      %s477 = sphi 0, %s474
      %s478 = sphi 0, %s477
      %s494 = sphi 0, %s478
    $region4: #{tpu_custom_call.1} parent=1 // loop_header_branch
      %35 = sbr.rel (%p33) target = $region8
    $region5: #{tpu_custom_call.1} parent=1 // loop_body
      %s37 = ssub.s32 %s32, 1
      %s38 = ssub.s32 %s32, 2
      %s45 = sadd.s32 1, %s40
      %p46 = scmp.ge.s32.totalorder %s45, 1
      %s47 = scalar_select %p46, 0, %s45
      %s48 = sadd.s32 1, %s39
      %s49 = scalar_select %p46, %s48, %s39
      %p50 = scmp.ge.s32.totalorder %s49, 2
      %s51 = scalar_select %p50, 0, %s49
      %s52 = ssub.s32 %s39, %s51
      %s53 = ssub.s32 %s40, %s47
      %s54 = sor.u32 %s52, %s53
      %p55 = scmp.eq.s32.totalorder %s54, 0
      %s57 = sadd.s32 %s56, 1
      %s58 = scalar_select %p55, %s56, %s57
      %p61 = pneg %p55
      %p62 = scmp.eq.s32.totalorder %s32, 1
      %p63 = por %p61, %p62
      %p64 = scmp.ne.s32.totalorder %s56, %s59
      %p65 = scmp.eq.s32.totalorder %s32, 0
      %p66 = por %p64, %p65
      %p67 = scmp.ne.s32.totalorder %s56, %s59
      %p68 = scmp.eq.s32.totalorder %s37, 1
      %p69 = por %p67, %p68
      %p70 = scmp.ne.s32.totalorder %s59, %s60
      %p71 = scmp.eq.s32.totalorder %s37, 0
      %p72 = por %p70, %p71
      %p73 = scmp.ne.s32.totalorder %s59, %s60
      %p74 = scmp.eq.s32.totalorder %s38, 1
      %p75 = por %p73, %p74
      %p77 = scmp.ne.s32.totalorder %s60, %s76
      %p78 = scmp.eq.s32.totalorder %s38, 0
      %p79 = por %p77, %p78
      %s80 = ssub.s32 %s39, %s51
      %p81 = scmp.eq.s32.totalorder %s80, 0
      %s83 = sadd.s32 %s82, 1
      %s84 = scalar_select %p81, %s82, %s83
      %p87 = pneg %p81
      %p88 = scmp.eq.s32.totalorder %s32, 1
      %p89 = por %p87, %p88
      %p90 = scmp.ne.s32.totalorder %s82, %s85
      %p91 = scmp.eq.s32.totalorder %s32, 0
      %p92 = por %p90, %p91
      %p93 = scmp.ne.s32.totalorder %s82, %s85
      %p94 = scmp.eq.s32.totalorder %s37, 1
      %p95 = por %p93, %p94
      %p96 = scmp.ne.s32.totalorder %s85, %s86
      %p97 = scmp.eq.s32.totalorder %s37, 0
      %p98 = por %p96, %p97
      %p99 = scmp.ne.s32.totalorder %s85, %s86
      %p100 = scmp.eq.s32.totalorder %s38, 1
      %p101 = por %p99, %p100
      %p103 = scmp.ne.s32.totalorder %s86, %s102
      %p104 = scmp.eq.s32.totalorder %s38, 0
      %p105 = por %p103, %p104
      %s107 = sadd.s32 %s106, 1
      %p110 = scmp.eq.s32.totalorder %s32, 1
      %p111 = scmp.ne.s32.totalorder %s106, %s108
      %p112 = scmp.eq.s32.totalorder %s32, 0
      %p113 = por %p111, %p112
      %p114 = scmp.ne.s32.totalorder %s106, %s108
      %p115 = scmp.eq.s32.totalorder %s37, 1
      %p116 = por %p114, %p115
      %p117 = scmp.ne.s32.totalorder %s108, %s109
      %p118 = scmp.eq.s32.totalorder %s37, 0
      %p119 = por %p117, %p118
      %p120 = scmp.ne.s32.totalorder %s108, %s109
      %p121 = scmp.eq.s32.totalorder %s38, 1
      %p122 = por %p120, %p121
      %p124 = scmp.ne.s32.totalorder %s109, %s123
      %p125 = scmp.eq.s32.totalorder %s38, 0
      %p126 = por %p124, %p125
      %s128 = sadd.s32 %s127, 1
      %p131 = scmp.eq.s32.totalorder %s32, 1
      %p132 = scmp.ne.s32.totalorder %s127, %s129
      %p133 = scmp.eq.s32.totalorder %s32, 0
      %p134 = por %p132, %p133
      %p135 = scmp.ne.s32.totalorder %s127, %s129
      %p136 = scmp.eq.s32.totalorder %s37, 1
      %p137 = por %p135, %p136
      %p138 = scmp.ne.s32.totalorder %s129, %s130
      %p139 = scmp.eq.s32.totalorder %s37, 0
      %p140 = por %p138, %p139
      %p141 = scmp.ne.s32.totalorder %s129, %s130
      %p142 = scmp.eq.s32.totalorder %s38, 1
      %p143 = por %p141, %p142
      %p145 = scmp.ne.s32.totalorder %s130, %s144
      %p146 = scmp.eq.s32.totalorder %s38, 0
      %p147 = por %p145, %p146
      %s149 = sadd.s32 %s148, 1
      %p152 = scmp.eq.s32.totalorder %s32, 1
      %p153 = scmp.ne.s32.totalorder %s148, %s150
      %p154 = scmp.eq.s32.totalorder %s32, 0
      %p155 = por %p153, %p154
      %p156 = scmp.ne.s32.totalorder %s148, %s150
      %p157 = scmp.eq.s32.totalorder %s37, 1
      %p158 = por %p156, %p157
      %p159 = scmp.ne.s32.totalorder %s150, %s151
      %p160 = scmp.eq.s32.totalorder %s37, 0
      %p161 = por %p159, %p160
      %p162 = scmp.ne.s32.totalorder %s150, %s151
      %p163 = scmp.eq.s32.totalorder %s38, 1
      %p164 = por %p162, %p163
      %p166 = scmp.ne.s32.totalorder %s151, %s165
      %p167 = scmp.eq.s32.totalorder %s38, 0
      %p168 = por %p166, %p167
      %s170 = sadd.s32 %s169, 1
      %p173 = scmp.eq.s32.totalorder %s32, 1
      %p174 = scmp.ne.s32.totalorder %s169, %s171
      %p175 = scmp.eq.s32.totalorder %s32, 0
      %p176 = por %p174, %p175
      %p177 = scmp.ne.s32.totalorder %s169, %s171
      %p178 = scmp.eq.s32.totalorder %s37, 1
      %p179 = por %p177, %p178
      %p180 = scmp.ne.s32.totalorder %s171, %s172
      %p181 = scmp.eq.s32.totalorder %s37, 0
      %p182 = por %p180, %p181
      %p183 = scmp.ne.s32.totalorder %s171, %s172
      %p184 = scmp.eq.s32.totalorder %s38, 1
      %p185 = por %p183, %p184
      %p187 = scmp.ne.s32.totalorder %s172, %s186
      %p188 = scmp.eq.s32.totalorder %s38, 0
      %p189 = por %p187, %p188
      %s191 = sadd.s32 %s190, 1
      %p194 = scmp.eq.s32.totalorder %s32, 1
      %p195 = scmp.ne.s32.totalorder %s190, %s192
      %p196 = scmp.eq.s32.totalorder %s32, 0
      %p197 = por %p195, %p196
      %p198 = scmp.ne.s32.totalorder %s190, %s192
      %p199 = scmp.eq.s32.totalorder %s37, 1
      %p200 = por %p198, %p199
      %p201 = scmp.ne.s32.totalorder %s192, %s193
      %p202 = scmp.eq.s32.totalorder %s37, 0
      %p203 = por %p201, %p202
      %p204 = scmp.ne.s32.totalorder %s192, %s193
      %p205 = scmp.eq.s32.totalorder %s38, 1
      %p206 = por %p204, %p205
      %p208 = scmp.ne.s32.totalorder %s193, %s207
      %p209 = scmp.eq.s32.totalorder %s38, 0
      %p210 = por %p208, %p209
      %s212 = sadd.s32 %s211, 1
      %p215 = scmp.eq.s32.totalorder %s32, 1
      %p216 = scmp.ne.s32.totalorder %s211, %s213
      %p217 = scmp.eq.s32.totalorder %s32, 0
      %p218 = por %p216, %p217
      %p219 = scmp.ne.s32.totalorder %s211, %s213
      %p220 = scmp.eq.s32.totalorder %s37, 1
      %p221 = por %p219, %p220
      %p222 = scmp.ne.s32.totalorder %s213, %s214
      %p223 = scmp.eq.s32.totalorder %s37, 0
      %p224 = por %p222, %p223
      %p225 = scmp.ne.s32.totalorder %s213, %s214
      %p226 = scmp.eq.s32.totalorder %s38, 1
      %p227 = por %p225, %p226
      %p229 = scmp.ne.s32.totalorder %s214, %s228
      %p230 = scmp.eq.s32.totalorder %s38, 0
      %p231 = por %p229, %p230
      %s233 = sadd.s32 %s232, 1
      %p236 = scmp.eq.s32.totalorder %s32, 1
      %p237 = scmp.ne.s32.totalorder %s232, %s234
      %p238 = scmp.eq.s32.totalorder %s32, 0
      %p239 = por %p237, %p238
      %p240 = scmp.ne.s32.totalorder %s232, %s234
      %p241 = scmp.eq.s32.totalorder %s37, 1
      %p242 = por %p240, %p241
      %p243 = scmp.ne.s32.totalorder %s234, %s235
      %p244 = scmp.eq.s32.totalorder %s37, 0
      %p245 = por %p243, %p244
      %p246 = scmp.ne.s32.totalorder %s234, %s235
      %p247 = scmp.eq.s32.totalorder %s38, 1
      %p248 = por %p246, %p247
      %p250 = scmp.ne.s32.totalorder %s235, %s249
      %p251 = scmp.eq.s32.totalorder %s38, 0
      %p252 = por %p250, %p251
      %s254 = sadd.s32 %s253, 1
      %p257 = scmp.eq.s32.totalorder %s32, 1
      %p258 = scmp.ne.s32.totalorder %s253, %s255
      %p259 = scmp.eq.s32.totalorder %s32, 0
      %p260 = por %p258, %p259
      %p261 = scmp.ne.s32.totalorder %s253, %s255
      %p262 = scmp.eq.s32.totalorder %s37, 1
      %p263 = por %p261, %p262
      %p264 = scmp.ne.s32.totalorder %s255, %s256
      %p265 = scmp.eq.s32.totalorder %s37, 0
      %p266 = por %p264, %p265
      %p267 = scmp.ne.s32.totalorder %s255, %s256
      %p268 = scmp.eq.s32.totalorder %s38, 1
      %p269 = por %p267, %p268
      %p271 = scmp.ne.s32.totalorder %s256, %s270
      %p272 = scmp.eq.s32.totalorder %s38, 0
      %p273 = por %p271, %p272
      %s275 = sadd.s32 %s274, 1
      %p278 = scmp.eq.s32.totalorder %s32, 1
      %p279 = scmp.ne.s32.totalorder %s274, %s276
      %p280 = scmp.eq.s32.totalorder %s32, 0
      %p281 = por %p279, %p280
      %p282 = scmp.ne.s32.totalorder %s274, %s276
      %p283 = scmp.eq.s32.totalorder %s37, 1
      %p284 = por %p282, %p283
      %p285 = scmp.ne.s32.totalorder %s276, %s277
      %p286 = scmp.eq.s32.totalorder %s37, 0
      %p287 = por %p285, %p286
      %p288 = scmp.ne.s32.totalorder %s276, %s277
      %p289 = scmp.eq.s32.totalorder %s38, 1
      %p290 = por %p288, %p289
      %p292 = scmp.ne.s32.totalorder %s277, %s291
      %p293 = scmp.eq.s32.totalorder %s38, 0
      %p294 = por %p292, %p293
      %s296 = sadd.s32 %s295, 1
      %p299 = scmp.eq.s32.totalorder %s32, 1
      %p300 = scmp.ne.s32.totalorder %s295, %s297
      %p301 = scmp.eq.s32.totalorder %s32, 0
      %p302 = por %p300, %p301
      %p303 = scmp.ne.s32.totalorder %s295, %s297
      %p304 = scmp.eq.s32.totalorder %s37, 1
      %p305 = por %p303, %p304
      %p306 = scmp.ne.s32.totalorder %s297, %s298
      %p307 = scmp.eq.s32.totalorder %s37, 0
      %p308 = por %p306, %p307
      %p309 = scmp.ne.s32.totalorder %s297, %s298
      %p310 = scmp.eq.s32.totalorder %s38, 1
      %p311 = por %p309, %p310
      %p313 = scmp.ne.s32.totalorder %s298, %s312
      %p314 = scmp.eq.s32.totalorder %s38, 0
      %p315 = por %p313, %p314
      %s317 = sadd.s32 %s316, 1
      %p320 = scmp.eq.s32.totalorder %s32, 1
      %p321 = scmp.ne.s32.totalorder %s316, %s318
      %p322 = scmp.eq.s32.totalorder %s32, 0
      %p323 = por %p321, %p322
      %p324 = scmp.ne.s32.totalorder %s316, %s318
      %p325 = scmp.eq.s32.totalorder %s37, 1
      %p326 = por %p324, %p325
      %p327 = scmp.ne.s32.totalorder %s318, %s319
      %p328 = scmp.eq.s32.totalorder %s37, 0
      %p329 = por %p327, %p328
      %p330 = scmp.ne.s32.totalorder %s318, %s319
      %p331 = scmp.eq.s32.totalorder %s38, 1
      %p332 = por %p330, %p331
      %p334 = scmp.ne.s32.totalorder %s319, %s333
      %p335 = scmp.eq.s32.totalorder %s38, 0
      %p336 = por %p334, %p335
      %s338 = sadd.s32 %s337, 1
      %p341 = scmp.eq.s32.totalorder %s32, 1
      %p342 = scmp.ne.s32.totalorder %s337, %s339
      %p343 = scmp.eq.s32.totalorder %s32, 0
      %p344 = por %p342, %p343
      %p345 = scmp.ne.s32.totalorder %s337, %s339
      %p346 = scmp.eq.s32.totalorder %s37, 1
      %p347 = por %p345, %p346
      %p348 = scmp.ne.s32.totalorder %s339, %s340
      %p349 = scmp.eq.s32.totalorder %s37, 0
      %p350 = por %p348, %p349
      %p351 = scmp.ne.s32.totalorder %s339, %s340
      %p352 = scmp.eq.s32.totalorder %s38, 1
      %p353 = por %p351, %p352
      %p355 = scmp.ne.s32.totalorder %s340, %s354
      %p356 = scmp.eq.s32.totalorder %s38, 0
      %p357 = por %p355, %p356
      %s359 = sadd.s32 %s358, 1
      %p362 = scmp.eq.s32.totalorder %s32, 1
      %p363 = scmp.ne.s32.totalorder %s358, %s360
      %p364 = scmp.eq.s32.totalorder %s32, 0
      %p365 = por %p363, %p364
      %p366 = scmp.ne.s32.totalorder %s358, %s360
      %p367 = scmp.eq.s32.totalorder %s37, 1
      %p368 = por %p366, %p367
      %p369 = scmp.ne.s32.totalorder %s360, %s361
      %p370 = scmp.eq.s32.totalorder %s37, 0
      %p371 = por %p369, %p370
      %p372 = scmp.ne.s32.totalorder %s360, %s361
      %p373 = scmp.eq.s32.totalorder %s38, 1
      %p374 = por %p372, %p373
      %p376 = scmp.ne.s32.totalorder %s361, %s375
      %p377 = scmp.eq.s32.totalorder %s38, 0
      %p378 = por %p376, %p377
      %s380 = sadd.s32 %s379, 1
      %p383 = scmp.eq.s32.totalorder %s32, 1
      %p384 = scmp.ne.s32.totalorder %s379, %s381
      %p385 = scmp.eq.s32.totalorder %s32, 0
      %p386 = por %p384, %p385
      %p387 = scmp.ne.s32.totalorder %s379, %s381
      %p388 = scmp.eq.s32.totalorder %s37, 1
      %p389 = por %p387, %p388
      %p390 = scmp.ne.s32.totalorder %s381, %s382
      %p391 = scmp.eq.s32.totalorder %s37, 0
      %p392 = por %p390, %p391
      %p393 = scmp.ne.s32.totalorder %s381, %s382
      %p394 = scmp.eq.s32.totalorder %s38, 1
      %p395 = por %p393, %p394
      %p397 = scmp.ne.s32.totalorder %s382, %s396
      %p398 = scmp.eq.s32.totalorder %s38, 0
      %p399 = por %p397, %p398
      %s401 = sadd.s32 %s400, 1
      %p404 = scmp.eq.s32.totalorder %s32, 1
      %p405 = scmp.ne.s32.totalorder %s400, %s402
      %p406 = scmp.eq.s32.totalorder %s32, 0
      %p407 = por %p405, %p406
      %p408 = scmp.ne.s32.totalorder %s400, %s402
      %p409 = scmp.eq.s32.totalorder %s37, 1
      %p410 = por %p408, %p409
      %p411 = scmp.ne.s32.totalorder %s402, %s403
      %p412 = scmp.eq.s32.totalorder %s37, 0
      %p413 = por %p411, %p412
      %p414 = scmp.ne.s32.totalorder %s402, %s403
      %p415 = scmp.eq.s32.totalorder %s38, 1
      %p416 = por %p414, %p415
      %p418 = scmp.ne.s32.totalorder %s403, %s417
      %p419 = scmp.eq.s32.totalorder %s38, 0
      %p420 = por %p418, %p419
      %s422 = sadd.s32 %s421, 1
      %p425 = scmp.eq.s32.totalorder %s32, 1
      %p426 = scmp.ne.s32.totalorder %s421, %s423
      %p427 = scmp.eq.s32.totalorder %s32, 0
      %p428 = por %p426, %p427
      %p429 = scmp.ne.s32.totalorder %s421, %s423
      %p430 = scmp.eq.s32.totalorder %s37, 1
      %p431 = por %p429, %p430
      %p432 = scmp.ne.s32.totalorder %s423, %s424
      %p433 = scmp.eq.s32.totalorder %s37, 0
      %p434 = por %p432, %p433
      %p435 = scmp.ne.s32.totalorder %s423, %s424
      %p436 = scmp.eq.s32.totalorder %s38, 1
      %p437 = por %p435, %p436
      %p439 = scmp.ne.s32.totalorder %s424, %s438
      %p440 = scmp.eq.s32.totalorder %s38, 0
      %p441 = por %p439, %p440
      %s442 = ssub.s32 %s39, %s51
      %s443 = ssub.s32 %s40, %s47
      %s444 = sor.u32 %s442, %s443
      %p445 = scmp.eq.s32.totalorder %s444, 0
      %s447 = sadd.s32 %s446, 1
      %s448 = scalar_select %p445, %s446, %s447
      %p451 = pneg %p445
      %p452 = scmp.eq.s32.totalorder %s32, 1
      %p453 = por %p451, %p452
      %p454 = scmp.ne.s32.totalorder %s446, %s449
      %p455 = scmp.eq.s32.totalorder %s32, 0
      %p456 = por %p454, %p455
      %p457 = scmp.ne.s32.totalorder %s446, %s449
      %p458 = scmp.eq.s32.totalorder %s37, 1
      %p459 = por %p457, %p458
      %p460 = scmp.ne.s32.totalorder %s449, %s450
      %p461 = scmp.eq.s32.totalorder %s37, 0
      %p462 = por %p460, %p461
      %p463 = scmp.ne.s32.totalorder %s449, %s450
      %p464 = scmp.eq.s32.totalorder %s38, 1
      %p465 = por %p463, %p464
      %p467 = scmp.ne.s32.totalorder %s450, %s466
      %p468 = scmp.eq.s32.totalorder %s38, 0
      %p469 = por %p467, %p468
      %s470 = ssub.s32 %s39, %s51
      %s471 = ssub.s32 %s40, %s47
      %s472 = sor.u32 %s470, %s471
      %p473 = scmp.eq.s32.totalorder %s472, 0
      %s475 = sadd.s32 %s474, 1
      %s476 = scalar_select %p473, %s474, %s475
      %p479 = pneg %p473
      %p480 = scmp.eq.s32.totalorder %s32, 1
      %p481 = por %p479, %p480
      %p482 = scmp.ne.s32.totalorder %s474, %s477
      %p483 = scmp.eq.s32.totalorder %s32, 0
      %p484 = por %p482, %p483
      %p485 = scmp.ne.s32.totalorder %s474, %s477
      %p486 = scmp.eq.s32.totalorder %s37, 1
      %p487 = por %p485, %p486
      %p488 = scmp.ne.s32.totalorder %s477, %s478
      %p489 = scmp.eq.s32.totalorder %s37, 0
      %p490 = por %p488, %p489
      %p491 = scmp.ne.s32.totalorder %s477, %s478
      %p492 = scmp.eq.s32.totalorder %s38, 1
      %p493 = por %p491, %p492
      %p495 = scmp.ne.s32.totalorder %s478, %s494
      %p496 = scmp.eq.s32.totalorder %s38, 0
      %p497 = por %p495, %p496
      %p498 = scmp.le.s32.totalorder 1, %s32
      %p499 = scmp.lt.s32.totalorder %s32, 3
      %p500 = pnand %p498, %p499
      %p501 = pneg %p500
      // Predicated region
      $region9: #{tpu_custom_call.1} parent=5 // pred_check
        _
      $region10: #{tpu_custom_call.1} parent=5 // pred_check_branch
        %503 = sbr.rel (%p500) target = $region12
      $region11: #{tpu_custom_call.1} parent=5 // pred_region
        %s504 = ssub.s32 %s32, 1
        // Predicated region
        $region13: #{tpu_custom_call.1} parent=11 // pred_check
          %p505 = pneg %p119
        $region14: #{tpu_custom_call.1} parent=11 // pred_check_branch
          %507 = sbr.rel (%p505) target = $region16
        $region15: #{tpu_custom_call.1} parent=11 // pred_region
          _
        $region16: #{tpu_custom_call.1} parent=11 // pred_fallthru
          _
        // Predicated region
        $region17: #{tpu_custom_call.1} parent=11 // pred_check
          %p508 = pneg %p140
        $region18: #{tpu_custom_call.1} parent=11 // pred_check_branch
          %510 = sbr.rel (%p508) target = $region20
        $region19: #{tpu_custom_call.1} parent=11 // pred_region
          _
        $region20: #{tpu_custom_call.1} parent=11 // pred_fallthru
          _
        // Predicated region
        $region21: #{tpu_custom_call.1} parent=11 // pred_check
          %p511 = pneg %p161
        $region22: #{tpu_custom_call.1} parent=11 // pred_check_branch
          %513 = sbr.rel (%p511) target = $region24
        $region23: #{tpu_custom_call.1} parent=11 // pred_region
          _
        $region24: #{tpu_custom_call.1} parent=11 // pred_fallthru
          _
        // Predicated region
        $region25: #{tpu_custom_call.1} parent=11 // pred_check
          %p514 = pneg %p182
        $region26: #{tpu_custom_call.1} parent=11 // pred_check_branch
          %516 = sbr.rel (%p514) target = $region28
        $region27: #{tpu_custom_call.1} parent=11 // pred_region
          _
        $region28: #{tpu_custom_call.1} parent=11 // pred_fallthru
          _
        // Predicated region
        $region29: #{tpu_custom_call.1} parent=11 // pred_check
          %p517 = pneg %p203
        $region30: #{tpu_custom_call.1} parent=11 // pred_check_branch
          %519 = sbr.rel (%p517) target = $region32
        $region31: #{tpu_custom_call.1} parent=11 // pred_region
          _
        $region32: #{tpu_custom_call.1} parent=11 // pred_fallthru
          _
        // Predicated region
        $region33: #{tpu_custom_call.1} parent=11 // pred_check
          %p520 = pneg %p224
        $region34: #{tpu_custom_call.1} parent=11 // pred_check_branch
          %522 = sbr.rel (%p520) target = $region36
        $region35: #{tpu_custom_call.1} parent=11 // pred_region
          _
        $region36: #{tpu_custom_call.1} parent=11 // pred_fallthru
          _
        // Predicated region
        $region37: #{tpu_custom_call.1} parent=11 // pred_check
          %p523 = pneg %p245
        $region38: #{tpu_custom_call.1} parent=11 // pred_check_branch
          %525 = sbr.rel (%p523) target = $region40
        $region39: #{tpu_custom_call.1} parent=11 // pred_region
          _
        $region40: #{tpu_custom_call.1} parent=11 // pred_fallthru
          _
        // Predicated region
        $region41: #{tpu_custom_call.1} parent=11 // pred_check
          %p526 = pneg %p266
        $region42: #{tpu_custom_call.1} parent=11 // pred_check_branch
          %528 = sbr.rel (%p526) target = $region44
        $region43: #{tpu_custom_call.1} parent=11 // pred_region
          _
        $region44: #{tpu_custom_call.1} parent=11 // pred_fallthru
          _
        // Predicated region
        $region45: #{tpu_custom_call.1} parent=11 // pred_check
          %p529 = pneg %p287
        $region46: #{tpu_custom_call.1} parent=11 // pred_check_branch
          %531 = sbr.rel (%p529) target = $region48
        $region47: #{tpu_custom_call.1} parent=11 // pred_region
          _
        $region48: #{tpu_custom_call.1} parent=11 // pred_fallthru
          _
        // Predicated region
        $region49: #{tpu_custom_call.1} parent=11 // pred_check
          %p532 = pneg %p308
        $region50: #{tpu_custom_call.1} parent=11 // pred_check_branch
          %534 = sbr.rel (%p532) target = $region52
        $region51: #{tpu_custom_call.1} parent=11 // pred_region
          _
        $region52: #{tpu_custom_call.1} parent=11 // pred_fallthru
          _
        // Predicated region
        $region53: #{tpu_custom_call.1} parent=11 // pred_check
          %p535 = pneg %p329
        $region54: #{tpu_custom_call.1} parent=11 // pred_check_branch
          %537 = sbr.rel (%p535) target = $region56
        $region55: #{tpu_custom_call.1} parent=11 // pred_region
          _
        $region56: #{tpu_custom_call.1} parent=11 // pred_fallthru
          _
        // Predicated region
        $region57: #{tpu_custom_call.1} parent=11 // pred_check
          %p538 = pneg %p350
        $region58: #{tpu_custom_call.1} parent=11 // pred_check_branch
          %540 = sbr.rel (%p538) target = $region60
        $region59: #{tpu_custom_call.1} parent=11 // pred_region
          _
        $region60: #{tpu_custom_call.1} parent=11 // pred_fallthru
          _
        // Predicated region
        $region61: #{tpu_custom_call.1} parent=11 // pred_check
          %p541 = pneg %p371
        $region62: #{tpu_custom_call.1} parent=11 // pred_check_branch
          %543 = sbr.rel (%p541) target = $region64
        $region63: #{tpu_custom_call.1} parent=11 // pred_region
          _
        $region64: #{tpu_custom_call.1} parent=11 // pred_fallthru
          _
        // Predicated region
        $region65: #{tpu_custom_call.1} parent=11 // pred_check
          %p544 = pneg %p392
        $region66: #{tpu_custom_call.1} parent=11 // pred_check_branch
          %546 = sbr.rel (%p544) target = $region68
        $region67: #{tpu_custom_call.1} parent=11 // pred_region
          _
        $region68: #{tpu_custom_call.1} parent=11 // pred_fallthru
          _
        // Predicated region
        $region69: #{tpu_custom_call.1} parent=11 // pred_check
          %p547 = pneg %p413
        $region70: #{tpu_custom_call.1} parent=11 // pred_check_branch
          %549 = sbr.rel (%p547) target = $region72
        $region71: #{tpu_custom_call.1} parent=11 // pred_region
          _
        $region72: #{tpu_custom_call.1} parent=11 // pred_fallthru
          _
        // Predicated region
        $region73: #{tpu_custom_call.1} parent=11 // pred_check
          %p550 = pneg %p434
        $region74: #{tpu_custom_call.1} parent=11 // pred_check_branch
          %552 = sbr.rel (%p550) target = $region76
        $region75: #{tpu_custom_call.1} parent=11 // pred_region
          _
        $region76: #{tpu_custom_call.1} parent=11 // pred_fallthru
          _
      $region12: #{tpu_custom_call.1} parent=5 // pred_fallthru
        _
      %p553 = scmp.lt.s32.totalorder %s32, 2
      // Predicated region
      $region77: #{tpu_custom_call.1} parent=5 // pred_check
        %p554 = pneg %p553
      $region78: #{tpu_custom_call.1} parent=5 // pred_check_branch
        %556 = sbr.rel (%p554) target = $region80
      $region79: #{tpu_custom_call.1} parent=5 // pred_region
        // Predicated region
        $region81: #{tpu_custom_call.1} parent=79 // pred_check
          %p557 = pneg %p66
        $region82: #{tpu_custom_call.1} parent=79 // pred_check_branch
          %559 = sbr.rel (%p557) target = $region84
        $region83: #{tpu_custom_call.1} parent=79 // pred_region
          %p560 = scmp.lt.s32.totalorder %s39, 1
          %s561 = scalar_select %p560, %s39, 1
          %p562 = scmp.lt.s32.totalorder %s40, 0
          %s563 = scalar_select %p562, %s40, 0
          %s564 = sadd.s32 %s563, %s561
          %s565 = smul.addr %s564, 8
          %s566 = scalar_lea.vmem %s0, %s565
        $region84: #{tpu_custom_call.1} parent=79 // pred_fallthru
          _
        // Predicated region
        $region85: #{tpu_custom_call.1} parent=79 // pred_check
          %p567 = pneg %p92
        $region86: #{tpu_custom_call.1} parent=79 // pred_check_branch
          %569 = sbr.rel (%p567) target = $region88
        $region87: #{tpu_custom_call.1} parent=79 // pred_region
          %p570 = scmp.lt.s32.totalorder %s39, 1
          %s571 = scalar_select %p570, %s39, 1
          %s572 = smul.addr %s571, 8
          %s573 = scalar_lea.vmem %s1, %s572
        $region88: #{tpu_custom_call.1} parent=79 // pred_fallthru
          _
      $region80: #{tpu_custom_call.1} parent=5 // pred_fallthru
        _
      %p574 = scmp.le.s32.totalorder 1, %s32
      %p575 = scmp.lt.s32.totalorder %s32, 3
      %p576 = pnand %p574, %p575
      %p577 = pneg %p576
      // Predicated region
      $region89: #{tpu_custom_call.1} parent=5 // pred_check
        _
      $region90: #{tpu_custom_call.1} parent=5 // pred_check_branch
        %579 = sbr.rel (%p576) target = $region92
      $region91: #{tpu_custom_call.1} parent=5 // pred_region
        %s580 = ssub.s32 %s32, 1
        %p581 = scmp.lt.s32.totalorder %s41, 1
        %s582 = scalar_select %p581, %s41, 1
        %p583 = scmp.lt.s32.totalorder %s42, 0
        %s584 = scalar_select %p583, %s42, 0
        %s585 = sadd.s32 %s584, %s582
        %s586 = smul.addr %s585, 8
        %s587 = scalar_lea.vmem %s0, %s586
        %p588 = pneg %p72
        %p589 = pneg %p69
        %p590 = scmp.lt.s32.totalorder %s41, 1
        %s591 = scalar_select %p590, %s41, 1
        %s592 = smul.addr %s591, 8
        %s593 = scalar_lea.vmem %s1, %s592
        %p594 = pneg %p98
        %p595 = pneg %p95
        %p596 = pneg %p119
        %p597 = pneg %p116
        %p598 = pneg %p140
        %p599 = pneg %p137
        %p600 = pneg %p161
        %p601 = pneg %p158
        %p602 = pneg %p182
        %p603 = pneg %p179
        %p604 = pneg %p203
        %p605 = pneg %p200
        %p606 = pneg %p224
        %p607 = pneg %p221
        %p608 = pneg %p245
        %p609 = pneg %p242
        %p610 = pneg %p266
        %p611 = pneg %p263
        %p612 = pneg %p287
        %p613 = pneg %p284
        %p614 = pneg %p308
        %p615 = pneg %p305
        %p616 = pneg %p329
        %p617 = pneg %p326
        %p618 = pneg %p350
        %p619 = pneg %p347
        %p620 = pneg %p371
        %p621 = pneg %p368
        %p622 = pneg %p392
        %p623 = pneg %p389
        %p624 = pneg %p413
        %p625 = pneg %p410
        %p626 = pneg %p434
        %p627 = pneg %p431
        %p628 = pneg %p462
        %p629 = pneg %p459
        %s630 = sand.u32 %s449, 1
        %s631 = scalar_lea.sflag [#allocation3], %s630
        %s632 = sand.u32 %s449, 1
        %s633 = smul.addr %s632, 8
        %s634 = scalar_lea.vmem [#allocation2], %s633
        %p635 = pneg %p490
        %p636 = pneg %p487
        %s637 = sand.u32 %s477, 1
        %s638 = scalar_lea.sflag [#allocation5], %s637
        %s639 = sand.u32 %s477, 1
        %s640 = smul.addr %s639, 32
        %s641 = scalar_lea.vmem [#allocation4], %s640
        %p642 = scmp.lt.s32.totalorder %s41, 1
        %s643 = scalar_select %p642, %s41, 1
        %p644 = scmp.lt.s32.totalorder %s42, 0
        %s645 = scalar_select %p644, %s42, 0
        %s646 = sadd.s32 %s645, %s643
        %s647 = smul.addr %s646, 8
        %s648 = scalar_lea.vmem %s0, %s647
        %p649 = scmp.lt.s32.totalorder %s41, 1
        %s650 = scalar_select %p649, %s41, 1
        %s651 = smul.addr %s650, 8
        %s652 = scalar_lea.vmem %s1, %s651
        %v654 = vld [vmem:[%s648] sm:$0xff]
        %v655 = vld [vmem:[%s652] sm:$0xff]
        %v656 = vpack.c.bf16 %v654, %v654
        %v657 = vpack.c.bf16 %v655, %v655
        %v658 = vld [vmem:[%s2] sm:$0xff]
        %v659 = vld [vmem:[%s2 + $0x8] sm:$0xff]
        %v660 = vld [vmem:[%s2 + $0x10] sm:$0xff]
        %v661 = vld [vmem:[%s2 + $0x18] sm:$0xff]
        %v662 = vld [vmem:[%s2 + $0x20] sm:$0xff]
        %v663 = vld [vmem:[%s2 + $0x28] sm:$0xff]
        %v664 = vld [vmem:[%s2 + $0x30] sm:$0xff]
        %v665 = vld [vmem:[%s2 + $0x38] sm:$0xff]
        %v666 = vld [vmem:[%s2 + $0x40] sm:$0xff]
        %v667 = vld [vmem:[%s2 + $0x48] sm:$0xff]
        %v668 = vld [vmem:[%s2 + $0x50] sm:$0xff]
        %v669 = vld [vmem:[%s2 + $0x58] sm:$0xff]
        %v670 = vld [vmem:[%s2 + $0x60] sm:$0xff]
        %v671 = vld [vmem:[%s2 + $0x68] sm:$0xff]
        %v672 = vld [vmem:[%s2 + $0x70] sm:$0xff]
        %v673 = vld [vmem:[%s2 + $0x78] sm:$0xff]
        %v674 = vpack.c.bf16 %v659, %v658
        %v675 = vpack.c.bf16 %v661, %v660
        %v676 = vpack.c.bf16 %v663, %v662
        %v677 = vpack.c.bf16 %v665, %v664
        %v678 = vpack.c.bf16 %v667, %v666
        %v679 = vpack.c.bf16 %v669, %v668
        %v680 = vpack.c.bf16 %v671, %v670
        %v681 = vpack.c.bf16 %v673, %v672
        %v682 = vld [vmem:[%s3] sm:$0x1]
        %v683 = vld [vmem:[%s3 + $0x1] sm:$0x1]
        %v684 = vld [vmem:[%s3 + $0x2] sm:$0x1]
        %v685 = vld [vmem:[%s3 + $0x3] sm:$0x1]
        %v690 = vlaneseq
        %v691 = vshrl.u32 %v690, 7
        %v692 = vsub.s32 0, %v691
        %v693 = vrot.slane %v682, %v692
        %v694 = vlaneseq
        %v695 = vshrl.u32 %v694, 7
        %v696 = vsub.s32 0, %v695
        %v697 = vrot.slane %v683, %v696
        %v698 = vlaneseq
        %v699 = vshrl.u32 %v698, 7
        %v700 = vsub.s32 0, %v699
        %v701 = vrot.slane %v684, %v700
        %v702 = vlaneseq
        %v703 = vshrl.u32 %v702, 7
        %v704 = vsub.s32 0, %v703
        %v705 = vrot.slane %v685, %v704
        %vm710 = vcmask 261120
        %v712 = vsel %vm710, %v656, 0
        %714 = vmatprep.subr.bf16.mxu0 0
        %715 = vmatpush1.bf16.msra.mxu0 %v674
        %716 = vmatprep.subr.bf16.mxu0 0
        %717 = vmatpush1.bf16.msra.mxu0 %v675
        %718 = vmatprep.subr.bf16.mxu0 0
        %719 = vmatpush1.bf16.msra.mxu0 0
        %720 = vmatprep.subr.bf16.mxu0 0
        %721 = vmatpush1.bf16.msra.mxu0 0
        %722 = vmatprep.subr.bf16.mxu0 0
        %723 = vmatpush1.bf16.msra.mxu0 0
        %724 = vmatprep.subr.bf16.mxu0 0
        %725 = vmatpush1.bf16.msra.mxu0 0
        %726 = vmatprep.subr.bf16.mxu0 0
        %727 = vmatpush1.bf16.msra.mxu0 0
        %728 = vmatprep.subr.bf16.mxu0 0
        %729 = vmatpush1.bf16.msra.mxu0 0
        %730 = vmatprep.subr.bf16.mxu0 0
        %731 = vmatpush1.bf16.msra.mxu0 0
        %732 = vmatprep.subr.bf16.mxu0 0
        %733 = vmatpush1.bf16.msra.mxu0 0
        %734 = vmatprep.subr.bf16.mxu0 0
        %735 = vmatpush1.bf16.msra.mxu0 0
        %736 = vmatprep.subr.bf16.mxu0 0
        %737 = vmatpush1.bf16.msra.mxu0 0
        %738 = vmatprep.subr.bf16.mxu0 0
        %739 = vmatpush1.bf16.msra.mxu0 0
        %740 = vmatprep.subr.bf16.mxu0 0
        %741 = vmatpush1.bf16.msra.mxu0 0
        %742 = vmatprep.subr.bf16.mxu0 0
        %743 = vmatpush1.bf16.msra.mxu0 0
        %744 = vmatprep.subr.bf16.mxu0 0
        %745 = vmatpush1.bf16.msra.mxu0 0
        %746 = vmatprep.mubr.bf16.mxu0 0
        %747 = vmatmul.mubr.bf16.gmra.mrb[0].mxu0 %v712
        %v748 = vpop.f32.mrb[0].mxu0
        %v749 = vadd.f32 %v693, %v748
        %v750 = vpop.f32.mrb[0].mxu0
        %v751 = vpop.f32.mrb[0].mxu0
        %v752 = vpop.f32.mrb[0].mxu0
        %753 = vdwg.mxu0
        %754 = vmatprep.subr.bf16.mxu0 0
        %755 = vmatpush1.bf16.msra.mxu0 %v676
        %756 = vmatprep.subr.bf16.mxu0 0
        %757 = vmatpush1.bf16.msra.mxu0 %v677
        %758 = vmatprep.subr.bf16.mxu0 0
        %759 = vmatpush1.bf16.msra.mxu0 0
        %760 = vmatprep.subr.bf16.mxu0 0
        %761 = vmatpush1.bf16.msra.mxu0 0
        %762 = vmatprep.subr.bf16.mxu0 0
        %763 = vmatpush1.bf16.msra.mxu0 0
        %764 = vmatprep.subr.bf16.mxu0 0
        %765 = vmatpush1.bf16.msra.mxu0 0
        %766 = vmatprep.subr.bf16.mxu0 0
        %767 = vmatpush1.bf16.msra.mxu0 0
        %768 = vmatprep.subr.bf16.mxu0 0
        %769 = vmatpush1.bf16.msra.mxu0 0
        %770 = vmatprep.subr.bf16.mxu0 0
        %771 = vmatpush1.bf16.msra.mxu0 0
        %772 = vmatprep.subr.bf16.mxu0 0
        %773 = vmatpush1.bf16.msra.mxu0 0
        %774 = vmatprep.subr.bf16.mxu0 0
        %775 = vmatpush1.bf16.msra.mxu0 0
        %776 = vmatprep.subr.bf16.mxu0 0
        %777 = vmatpush1.bf16.msra.mxu0 0
        %778 = vmatprep.subr.bf16.mxu0 0
        %779 = vmatpush1.bf16.msra.mxu0 0
        %780 = vmatprep.subr.bf16.mxu0 0
        %781 = vmatpush1.bf16.msra.mxu0 0
        %782 = vmatprep.subr.bf16.mxu0 0
        %783 = vmatpush1.bf16.msra.mxu0 0
        %784 = vmatprep.subr.bf16.mxu0 0
        %785 = vmatpush1.bf16.msra.mxu0 0
        %786 = vmatprep.mubr.bf16.mxu0 0
        %787 = vmatmul.mubr.bf16.gmra.mrb[0].mxu0 %v712
        %v788 = vpop.f32.mrb[0].mxu0
        %v789 = vadd.f32 %v697, %v788
        %v790 = vpop.f32.mrb[0].mxu0
        %v791 = vpop.f32.mrb[0].mxu0
        %v792 = vpop.f32.mrb[0].mxu0
        %793 = vdwg.mxu0
        %794 = vmatprep.subr.bf16.mxu0 0
        %795 = vmatpush1.bf16.msra.mxu0 %v678
        %796 = vmatprep.subr.bf16.mxu0 0
        %797 = vmatpush1.bf16.msra.mxu0 %v679
        %798 = vmatprep.subr.bf16.mxu0 0
        %799 = vmatpush1.bf16.msra.mxu0 0
        %800 = vmatprep.subr.bf16.mxu0 0
        %801 = vmatpush1.bf16.msra.mxu0 0
        %802 = vmatprep.subr.bf16.mxu0 0
        %803 = vmatpush1.bf16.msra.mxu0 0
        %804 = vmatprep.subr.bf16.mxu0 0
        %805 = vmatpush1.bf16.msra.mxu0 0
        %806 = vmatprep.subr.bf16.mxu0 0
        %807 = vmatpush1.bf16.msra.mxu0 0
        %808 = vmatprep.subr.bf16.mxu0 0
        %809 = vmatpush1.bf16.msra.mxu0 0
        %810 = vmatprep.subr.bf16.mxu0 0
        %811 = vmatpush1.bf16.msra.mxu0 0
        %812 = vmatprep.subr.bf16.mxu0 0
        %813 = vmatpush1.bf16.msra.mxu0 0
        %814 = vmatprep.subr.bf16.mxu0 0
        %815 = vmatpush1.bf16.msra.mxu0 0
        %816 = vmatprep.subr.bf16.mxu0 0
        %817 = vmatpush1.bf16.msra.mxu0 0
        %818 = vmatprep.subr.bf16.mxu0 0
        %819 = vmatpush1.bf16.msra.mxu0 0
        %820 = vmatprep.subr.bf16.mxu0 0
        %821 = vmatpush1.bf16.msra.mxu0 0
        %822 = vmatprep.subr.bf16.mxu0 0
        %823 = vmatpush1.bf16.msra.mxu0 0
        %824 = vmatprep.subr.bf16.mxu0 0
        %825 = vmatpush1.bf16.msra.mxu0 0
        %826 = vmatprep.mubr.bf16.mxu0 0
        %827 = vmatmul.mubr.bf16.gmra.mrb[0].mxu0 %v712
        %v828 = vpop.f32.mrb[0].mxu0
        %v829 = vadd.f32 %v701, %v828
        %v830 = vpop.f32.mrb[0].mxu0
        %v831 = vpop.f32.mrb[0].mxu0
        %v832 = vpop.f32.mrb[0].mxu0
        %833 = vdwg.mxu0
        %834 = vmatprep.subr.bf16.mxu0 0
        %835 = vmatpush1.bf16.msra.mxu0 %v680
        %836 = vmatprep.subr.bf16.mxu0 0
        %837 = vmatpush1.bf16.msra.mxu0 %v681
        %838 = vmatprep.subr.bf16.mxu0 0
        %839 = vmatpush1.bf16.msra.mxu0 0
        %840 = vmatprep.subr.bf16.mxu0 0
        %841 = vmatpush1.bf16.msra.mxu0 0
        %842 = vmatprep.subr.bf16.mxu0 0
        %843 = vmatpush1.bf16.msra.mxu0 0
        %844 = vmatprep.subr.bf16.mxu0 0
        %845 = vmatpush1.bf16.msra.mxu0 0
        %846 = vmatprep.subr.bf16.mxu0 0
        %847 = vmatpush1.bf16.msra.mxu0 0
        %848 = vmatprep.subr.bf16.mxu0 0
        %849 = vmatpush1.bf16.msra.mxu0 0
        %850 = vmatprep.subr.bf16.mxu0 0
        %851 = vmatpush1.bf16.msra.mxu0 0
        %852 = vmatprep.subr.bf16.mxu0 0
        %853 = vmatpush1.bf16.msra.mxu0 0
        %854 = vmatprep.subr.bf16.mxu0 0
        %855 = vmatpush1.bf16.msra.mxu0 0
        %856 = vmatprep.subr.bf16.mxu0 0
        %857 = vmatpush1.bf16.msra.mxu0 0
        %858 = vmatprep.subr.bf16.mxu0 0
        %859 = vmatpush1.bf16.msra.mxu0 0
        %860 = vmatprep.subr.bf16.mxu0 0
        %861 = vmatpush1.bf16.msra.mxu0 0
        %862 = vmatprep.subr.bf16.mxu0 0
        %863 = vmatpush1.bf16.msra.mxu0 0
        %864 = vmatprep.subr.bf16.mxu0 0
        %865 = vmatpush1.bf16.msra.mxu0 0
        %866 = vmatprep.mubr.bf16.mxu0 0
        %867 = vmatmul.mubr.bf16.gmra.mrb[0].mxu0 %v712
        %v868 = vpop.f32.mrb[0].mxu0
        %v869 = vadd.f32 %v705, %v868
        %v870 = vpop.f32.mrb[0].mxu0
        %v871 = vpop.f32.mrb[0].mxu0
        %v872 = vpop.f32.mrb[0].mxu0
        %873 = vdwg.mxu0
        %v874 = vld [vmem:[%s4] sm:$0xff]
        %v875 = vld [vmem:[%s4 + $0x8] sm:$0xff]
        %v876 = vld [vmem:[%s4 + $0x10] sm:$0xff]
        %v877 = vld [vmem:[%s4 + $0x18] sm:$0xff]
        %v878 = vld [vmem:[%s4 + $0x20] sm:$0xff]
        %v879 = vld [vmem:[%s4 + $0x28] sm:$0xff]
        %v880 = vld [vmem:[%s4 + $0x30] sm:$0xff]
        %v881 = vld [vmem:[%s4 + $0x38] sm:$0xff]
        %v882 = vld [vmem:[%s4 + $0x40] sm:$0xff]
        %v883 = vld [vmem:[%s4 + $0x48] sm:$0xff]
        %v884 = vld [vmem:[%s4 + $0x50] sm:$0xff]
        %v885 = vld [vmem:[%s4 + $0x58] sm:$0xff]
        %v886 = vld [vmem:[%s4 + $0x60] sm:$0xff]
        %v887 = vld [vmem:[%s4 + $0x68] sm:$0xff]
        %v888 = vld [vmem:[%s4 + $0x70] sm:$0xff]
        %v889 = vld [vmem:[%s4 + $0x78] sm:$0xff]
        %v890 = vpack.c.bf16 %v875, %v874
        %v891 = vpack.c.bf16 %v877, %v876
        %v892 = vpack.c.bf16 %v879, %v878
        %v893 = vpack.c.bf16 %v881, %v880
        %v894 = vpack.c.bf16 %v883, %v882
        %v895 = vpack.c.bf16 %v885, %v884
        %v896 = vpack.c.bf16 %v887, %v886
        %v897 = vpack.c.bf16 %v889, %v888
        %v898 = vld [vmem:[%s5] sm:$0x1]
        %v899 = vld [vmem:[%s5 + $0x1] sm:$0x1]
        %v900 = vld [vmem:[%s5 + $0x2] sm:$0x1]
        %v901 = vld [vmem:[%s5 + $0x3] sm:$0x1]
        %v906 = vlaneseq
        %v907 = vshrl.u32 %v906, 7
        %v908 = vsub.s32 0, %v907
        %v909 = vrot.slane %v898, %v908
        %v910 = vlaneseq
        %v911 = vshrl.u32 %v910, 7
        %v912 = vsub.s32 0, %v911
        %v913 = vrot.slane %v899, %v912
        %v914 = vlaneseq
        %v915 = vshrl.u32 %v914, 7
        %v916 = vsub.s32 0, %v915
        %v917 = vrot.slane %v900, %v916
        %v918 = vlaneseq
        %v919 = vshrl.u32 %v918, 7
        %v920 = vsub.s32 0, %v919
        %v921 = vrot.slane %v901, %v920
        %v927 = vsel %vm710, %v657, 0
        %929 = vmatprep.subr.bf16.mxu0 0
        %930 = vmatpush1.bf16.msra.mxu0 %v890
        %931 = vmatprep.subr.bf16.mxu0 0
        %932 = vmatpush1.bf16.msra.mxu0 %v891
        %933 = vmatprep.subr.bf16.mxu0 0
        %934 = vmatpush1.bf16.msra.mxu0 0
        %935 = vmatprep.subr.bf16.mxu0 0
        %936 = vmatpush1.bf16.msra.mxu0 0
        %937 = vmatprep.subr.bf16.mxu0 0
        %938 = vmatpush1.bf16.msra.mxu0 0
        %939 = vmatprep.subr.bf16.mxu0 0
        %940 = vmatpush1.bf16.msra.mxu0 0
        %941 = vmatprep.subr.bf16.mxu0 0
        %942 = vmatpush1.bf16.msra.mxu0 0
        %943 = vmatprep.subr.bf16.mxu0 0
        %944 = vmatpush1.bf16.msra.mxu0 0
        %945 = vmatprep.subr.bf16.mxu0 0
        %946 = vmatpush1.bf16.msra.mxu0 0
        %947 = vmatprep.subr.bf16.mxu0 0
        %948 = vmatpush1.bf16.msra.mxu0 0
        %949 = vmatprep.subr.bf16.mxu0 0
        %950 = vmatpush1.bf16.msra.mxu0 0
        %951 = vmatprep.subr.bf16.mxu0 0
        %952 = vmatpush1.bf16.msra.mxu0 0
        %953 = vmatprep.subr.bf16.mxu0 0
        %954 = vmatpush1.bf16.msra.mxu0 0
        %955 = vmatprep.subr.bf16.mxu0 0
        %956 = vmatpush1.bf16.msra.mxu0 0
        %957 = vmatprep.subr.bf16.mxu0 0
        %958 = vmatpush1.bf16.msra.mxu0 0
        %959 = vmatprep.subr.bf16.mxu0 0
        %960 = vmatpush1.bf16.msra.mxu0 0
        %961 = vmatprep.mubr.bf16.mxu0 0
        %962 = vmatmul.mubr.bf16.gmra.mrb[0].mxu0 %v927
        %v963 = vpop.f32.mrb[0].mxu0
        %v964 = vadd.f32 %v909, %v963
        %v965 = vpop.f32.mrb[0].mxu0
        %v966 = vpop.f32.mrb[0].mxu0
        %v967 = vpop.f32.mrb[0].mxu0
        %968 = vdwg.mxu0
        %969 = vmatprep.subr.bf16.mxu0 0
        %970 = vmatpush1.bf16.msra.mxu0 %v892
        %971 = vmatprep.subr.bf16.mxu0 0
        %972 = vmatpush1.bf16.msra.mxu0 %v893
        %973 = vmatprep.subr.bf16.mxu0 0
        %974 = vmatpush1.bf16.msra.mxu0 0
        %975 = vmatprep.subr.bf16.mxu0 0
        %976 = vmatpush1.bf16.msra.mxu0 0
        %977 = vmatprep.subr.bf16.mxu0 0
        %978 = vmatpush1.bf16.msra.mxu0 0
        %979 = vmatprep.subr.bf16.mxu0 0
        %980 = vmatpush1.bf16.msra.mxu0 0
        %981 = vmatprep.subr.bf16.mxu0 0
        %982 = vmatpush1.bf16.msra.mxu0 0
        %983 = vmatprep.subr.bf16.mxu0 0
        %984 = vmatpush1.bf16.msra.mxu0 0
        %985 = vmatprep.subr.bf16.mxu0 0
        %986 = vmatpush1.bf16.msra.mxu0 0
        %987 = vmatprep.subr.bf16.mxu0 0
        %988 = vmatpush1.bf16.msra.mxu0 0
        %989 = vmatprep.subr.bf16.mxu0 0
        %990 = vmatpush1.bf16.msra.mxu0 0
        %991 = vmatprep.subr.bf16.mxu0 0
        %992 = vmatpush1.bf16.msra.mxu0 0
        %993 = vmatprep.subr.bf16.mxu0 0
        %994 = vmatpush1.bf16.msra.mxu0 0
        %995 = vmatprep.subr.bf16.mxu0 0
        %996 = vmatpush1.bf16.msra.mxu0 0
        %997 = vmatprep.subr.bf16.mxu0 0
        %998 = vmatpush1.bf16.msra.mxu0 0
        %999 = vmatprep.subr.bf16.mxu0 0
        %1000 = vmatpush1.bf16.msra.mxu0 0
        %1001 = vmatprep.mubr.bf16.mxu0 0
        %1002 = vmatmul.mubr.bf16.gmra.mrb[0].mxu0 %v927
        %v1003 = vpop.f32.mrb[0].mxu0
        %v1004 = vadd.f32 %v913, %v1003
        %v1005 = vpop.f32.mrb[0].mxu0
        %v1006 = vpop.f32.mrb[0].mxu0
        %v1007 = vpop.f32.mrb[0].mxu0
        %1008 = vdwg.mxu0
        %1009 = vmatprep.subr.bf16.mxu0 0
        %1010 = vmatpush1.bf16.msra.mxu0 %v894
        %1011 = vmatprep.subr.bf16.mxu0 0
        %1012 = vmatpush1.bf16.msra.mxu0 %v895
        %1013 = vmatprep.subr.bf16.mxu0 0
        %1014 = vmatpush1.bf16.msra.mxu0 0
        %1015 = vmatprep.subr.bf16.mxu0 0
        %1016 = vmatpush1.bf16.msra.mxu0 0
        %1017 = vmatprep.subr.bf16.mxu0 0
        %1018 = vmatpush1.bf16.msra.mxu0 0
        %1019 = vmatprep.subr.bf16.mxu0 0
        %1020 = vmatpush1.bf16.msra.mxu0 0
        %1021 = vmatprep.subr.bf16.mxu0 0
        %1022 = vmatpush1.bf16.msra.mxu0 0
        %1023 = vmatprep.subr.bf16.mxu0 0
        %1024 = vmatpush1.bf16.msra.mxu0 0
        %1025 = vmatprep.subr.bf16.mxu0 0
        %1026 = vmatpush1.bf16.msra.mxu0 0
        %1027 = vmatprep.subr.bf16.mxu0 0
        %1028 = vmatpush1.bf16.msra.mxu0 0
        %1029 = vmatprep.subr.bf16.mxu0 0
        %1030 = vmatpush1.bf16.msra.mxu0 0
        %1031 = vmatprep.subr.bf16.mxu0 0
        %1032 = vmatpush1.bf16.msra.mxu0 0
        %1033 = vmatprep.subr.bf16.mxu0 0
        %1034 = vmatpush1.bf16.msra.mxu0 0
        %1035 = vmatprep.subr.bf16.mxu0 0
        %1036 = vmatpush1.bf16.msra.mxu0 0
        %1037 = vmatprep.subr.bf16.mxu0 0
        %1038 = vmatpush1.bf16.msra.mxu0 0
        %1039 = vmatprep.subr.bf16.mxu0 0
        %1040 = vmatpush1.bf16.msra.mxu0 0
        %1041 = vmatprep.mubr.bf16.mxu0 0
        %1042 = vmatmul.mubr.bf16.gmra.mrb[0].mxu0 %v927
        %v1043 = vpop.f32.mrb[0].mxu0
        %v1044 = vadd.f32 %v917, %v1043
        %v1045 = vpop.f32.mrb[0].mxu0
        %v1046 = vpop.f32.mrb[0].mxu0
        %v1047 = vpop.f32.mrb[0].mxu0
        %1048 = vdwg.mxu0
        %1049 = vmatprep.subr.bf16.mxu0 0
        %1050 = vmatpush1.bf16.msra.mxu0 %v896
        %1051 = vmatprep.subr.bf16.mxu0 0
        %1052 = vmatpush1.bf16.msra.mxu0 %v897
        %1053 = vmatprep.subr.bf16.mxu0 0
        %1054 = vmatpush1.bf16.msra.mxu0 0
        %1055 = vmatprep.subr.bf16.mxu0 0
        %1056 = vmatpush1.bf16.msra.mxu0 0
        %1057 = vmatprep.subr.bf16.mxu0 0
        %1058 = vmatpush1.bf16.msra.mxu0 0
        %1059 = vmatprep.subr.bf16.mxu0 0
        %1060 = vmatpush1.bf16.msra.mxu0 0
        %1061 = vmatprep.subr.bf16.mxu0 0
        %1062 = vmatpush1.bf16.msra.mxu0 0
        %1063 = vmatprep.subr.bf16.mxu0 0
        %1064 = vmatpush1.bf16.msra.mxu0 0
        %1065 = vmatprep.subr.bf16.mxu0 0
        %1066 = vmatpush1.bf16.msra.mxu0 0
        %1067 = vmatprep.subr.bf16.mxu0 0
        %1068 = vmatpush1.bf16.msra.mxu0 0
        %1069 = vmatprep.subr.bf16.mxu0 0
        %1070 = vmatpush1.bf16.msra.mxu0 0
        %1071 = vmatprep.subr.bf16.mxu0 0
        %1072 = vmatpush1.bf16.msra.mxu0 0
        %1073 = vmatprep.subr.bf16.mxu0 0
        %1074 = vmatpush1.bf16.msra.mxu0 0
        %1075 = vmatprep.subr.bf16.mxu0 0
        %1076 = vmatpush1.bf16.msra.mxu0 0
        %1077 = vmatprep.subr.bf16.mxu0 0
        %1078 = vmatpush1.bf16.msra.mxu0 0
        %1079 = vmatprep.subr.bf16.mxu0 0
        %1080 = vmatpush1.bf16.msra.mxu0 0
        %1081 = vmatprep.mubr.bf16.mxu0 0
        %1082 = vmatmul.mubr.bf16.gmra.mrb[0].mxu0 %v927
        %v1083 = vpop.f32.mrb[0].mxu0
        %v1084 = vadd.f32 %v921, %v1083
        %v1085 = vpop.f32.mrb[0].mxu0
        %v1086 = vpop.f32.mrb[0].mxu0
        %v1087 = vpop.f32.mrb[0].mxu0
        %1088 = vdwg.mxu0
        %v1089 = vld [vmem:[%s6] sm:$0xff]
        %v1090 = vld [vmem:[%s6 + $0x8] sm:$0xff]
        %v1091 = vld [vmem:[%s6 + $0x10] sm:$0xff]
        %v1092 = vld [vmem:[%s6 + $0x18] sm:$0xff]
        %v1093 = vld [vmem:[%s6 + $0x20] sm:$0xff]
        %v1094 = vld [vmem:[%s6 + $0x28] sm:$0xff]
        %v1095 = vld [vmem:[%s6 + $0x30] sm:$0xff]
        %v1096 = vld [vmem:[%s6 + $0x38] sm:$0xff]
        %v1097 = vld [vmem:[%s6 + $0x40] sm:$0xff]
        %v1098 = vld [vmem:[%s6 + $0x48] sm:$0xff]
        %v1099 = vld [vmem:[%s6 + $0x50] sm:$0xff]
        %v1100 = vld [vmem:[%s6 + $0x58] sm:$0xff]
        %v1101 = vld [vmem:[%s6 + $0x60] sm:$0xff]
        %v1102 = vld [vmem:[%s6 + $0x68] sm:$0xff]
        %v1103 = vld [vmem:[%s6 + $0x70] sm:$0xff]
        %v1104 = vld [vmem:[%s6 + $0x78] sm:$0xff]
        %v1105 = vpack.c.bf16 %v1090, %v1089
        %v1106 = vpack.c.bf16 %v1092, %v1091
        %v1107 = vpack.c.bf16 %v1094, %v1093
        %v1108 = vpack.c.bf16 %v1096, %v1095
        %v1109 = vpack.c.bf16 %v1098, %v1097
        %v1110 = vpack.c.bf16 %v1100, %v1099
        %v1111 = vpack.c.bf16 %v1102, %v1101
        %v1112 = vpack.c.bf16 %v1104, %v1103
        %v1113 = vld [vmem:[%s7] sm:$0x1]
        %v1114 = vld [vmem:[%s7 + $0x1] sm:$0x1]
        %v1115 = vld [vmem:[%s7 + $0x2] sm:$0x1]
        %v1116 = vld [vmem:[%s7 + $0x3] sm:$0x1]
        %v1121 = vlaneseq
        %v1122 = vshrl.u32 %v1121, 7
        %v1123 = vsub.s32 0, %v1122
        %v1124 = vrot.slane %v1113, %v1123
        %v1125 = vlaneseq
        %v1126 = vshrl.u32 %v1125, 7
        %v1127 = vsub.s32 0, %v1126
        %v1128 = vrot.slane %v1114, %v1127
        %v1129 = vlaneseq
        %v1130 = vshrl.u32 %v1129, 7
        %v1131 = vsub.s32 0, %v1130
        %v1132 = vrot.slane %v1115, %v1131
        %v1133 = vlaneseq
        %v1134 = vshrl.u32 %v1133, 7
        %v1135 = vsub.s32 0, %v1134
        %v1136 = vrot.slane %v1116, %v1135
        %1141 = vmatprep.subr.bf16.mxu0 0
        %1142 = vmatpush1.bf16.msra.mxu0 %v1105
        %1143 = vmatprep.subr.bf16.mxu0 0
        %1144 = vmatpush1.bf16.msra.mxu0 %v1106
        %1145 = vmatprep.subr.bf16.mxu0 0
        %1146 = vmatpush1.bf16.msra.mxu0 0
        %1147 = vmatprep.subr.bf16.mxu0 0
        %1148 = vmatpush1.bf16.msra.mxu0 0
        %1149 = vmatprep.subr.bf16.mxu0 0
        %1150 = vmatpush1.bf16.msra.mxu0 0
        %1151 = vmatprep.subr.bf16.mxu0 0
        %1152 = vmatpush1.bf16.msra.mxu0 0
        %1153 = vmatprep.subr.bf16.mxu0 0
        %1154 = vmatpush1.bf16.msra.mxu0 0
        %1155 = vmatprep.subr.bf16.mxu0 0
        %1156 = vmatpush1.bf16.msra.mxu0 0
        %1157 = vmatprep.subr.bf16.mxu0 0
        %1158 = vmatpush1.bf16.msra.mxu0 0
        %1159 = vmatprep.subr.bf16.mxu0 0
        %1160 = vmatpush1.bf16.msra.mxu0 0
        %1161 = vmatprep.subr.bf16.mxu0 0
        %1162 = vmatpush1.bf16.msra.mxu0 0
        %1163 = vmatprep.subr.bf16.mxu0 0
        %1164 = vmatpush1.bf16.msra.mxu0 0
        %1165 = vmatprep.subr.bf16.mxu0 0
        %1166 = vmatpush1.bf16.msra.mxu0 0
        %1167 = vmatprep.subr.bf16.mxu0 0
        %1168 = vmatpush1.bf16.msra.mxu0 0
        %1169 = vmatprep.subr.bf16.mxu0 0
        %1170 = vmatpush1.bf16.msra.mxu0 0
        %1171 = vmatprep.subr.bf16.mxu0 0
        %1172 = vmatpush1.bf16.msra.mxu0 0
        %1173 = vmatprep.mubr.bf16.mxu0 0
        %1174 = vmatmul.mubr.bf16.gmra.mrb[0].mxu0 %v927
        %v1175 = vpop.f32.mrb[0].mxu0
        %v1176 = vadd.f32 %v1124, %v1175
        %v1177 = vpop.f32.mrb[0].mxu0
        %v1178 = vpop.f32.mrb[0].mxu0
        %v1179 = vpop.f32.mrb[0].mxu0
        %1180 = vdwg.mxu0
        %1181 = vmatprep.subr.bf16.mxu0 0
        %1182 = vmatpush1.bf16.msra.mxu0 %v1107
        %1183 = vmatprep.subr.bf16.mxu0 0
        %1184 = vmatpush1.bf16.msra.mxu0 %v1108
        %1185 = vmatprep.subr.bf16.mxu0 0
        %1186 = vmatpush1.bf16.msra.mxu0 0
        %1187 = vmatprep.subr.bf16.mxu0 0
        %1188 = vmatpush1.bf16.msra.mxu0 0
        %1189 = vmatprep.subr.bf16.mxu0 0
        %1190 = vmatpush1.bf16.msra.mxu0 0
        %1191 = vmatprep.subr.bf16.mxu0 0
        %1192 = vmatpush1.bf16.msra.mxu0 0
        %1193 = vmatprep.subr.bf16.mxu0 0
        %1194 = vmatpush1.bf16.msra.mxu0 0
        %1195 = vmatprep.subr.bf16.mxu0 0
        %1196 = vmatpush1.bf16.msra.mxu0 0
        %1197 = vmatprep.subr.bf16.mxu0 0
        %1198 = vmatpush1.bf16.msra.mxu0 0
        %1199 = vmatprep.subr.bf16.mxu0 0
        %1200 = vmatpush1.bf16.msra.mxu0 0
        %1201 = vmatprep.subr.bf16.mxu0 0
        %1202 = vmatpush1.bf16.msra.mxu0 0
        %1203 = vmatprep.subr.bf16.mxu0 0
        %1204 = vmatpush1.bf16.msra.mxu0 0
        %1205 = vmatprep.subr.bf16.mxu0 0
        %1206 = vmatpush1.bf16.msra.mxu0 0
        %1207 = vmatprep.subr.bf16.mxu0 0
        %1208 = vmatpush1.bf16.msra.mxu0 0
        %1209 = vmatprep.subr.bf16.mxu0 0
        %1210 = vmatpush1.bf16.msra.mxu0 0
        %1211 = vmatprep.subr.bf16.mxu0 0
        %1212 = vmatpush1.bf16.msra.mxu0 0
        %1213 = vmatprep.mubr.bf16.mxu0 0
        %1214 = vmatmul.mubr.bf16.gmra.mrb[0].mxu0 %v927
        %v1215 = vpop.f32.mrb[0].mxu0
        %v1216 = vadd.f32 %v1128, %v1215
        %v1217 = vpop.f32.mrb[0].mxu0
        %v1218 = vpop.f32.mrb[0].mxu0
        %v1219 = vpop.f32.mrb[0].mxu0
        %1220 = vdwg.mxu0
        %1221 = vmatprep.subr.bf16.mxu0 0
        %1222 = vmatpush1.bf16.msra.mxu0 %v1109
        %1223 = vmatprep.subr.bf16.mxu0 0
        %1224 = vmatpush1.bf16.msra.mxu0 %v1110
        %1225 = vmatprep.subr.bf16.mxu0 0
        %1226 = vmatpush1.bf16.msra.mxu0 0
        %1227 = vmatprep.subr.bf16.mxu0 0
        %1228 = vmatpush1.bf16.msra.mxu0 0
        %1229 = vmatprep.subr.bf16.mxu0 0
        %1230 = vmatpush1.bf16.msra.mxu0 0
        %1231 = vmatprep.subr.bf16.mxu0 0
        %1232 = vmatpush1.bf16.msra.mxu0 0
        %1233 = vmatprep.subr.bf16.mxu0 0
        %1234 = vmatpush1.bf16.msra.mxu0 0
        %1235 = vmatprep.subr.bf16.mxu0 0
        %1236 = vmatpush1.bf16.msra.mxu0 0
        %1237 = vmatprep.subr.bf16.mxu0 0
        %1238 = vmatpush1.bf16.msra.mxu0 0
        %1239 = vmatprep.subr.bf16.mxu0 0
        %1240 = vmatpush1.bf16.msra.mxu0 0
        %1241 = vmatprep.subr.bf16.mxu0 0
        %1242 = vmatpush1.bf16.msra.mxu0 0
        %1243 = vmatprep.subr.bf16.mxu0 0
        %1244 = vmatpush1.bf16.msra.mxu0 0
        %1245 = vmatprep.subr.bf16.mxu0 0
        %1246 = vmatpush1.bf16.msra.mxu0 0
        %1247 = vmatprep.subr.bf16.mxu0 0
        %1248 = vmatpush1.bf16.msra.mxu0 0
        %1249 = vmatprep.subr.bf16.mxu0 0
        %1250 = vmatpush1.bf16.msra.mxu0 0
        %1251 = vmatprep.subr.bf16.mxu0 0
        %1252 = vmatpush1.bf16.msra.mxu0 0
        %1253 = vmatprep.mubr.bf16.mxu0 0
        %1254 = vmatmul.mubr.bf16.gmra.mrb[0].mxu0 %v927
        %v1255 = vpop.f32.mrb[0].mxu0
        %v1256 = vadd.f32 %v1132, %v1255
        %v1257 = vpop.f32.mrb[0].mxu0
        %v1258 = vpop.f32.mrb[0].mxu0
        %v1259 = vpop.f32.mrb[0].mxu0
        %1260 = vdwg.mxu0
        %1261 = vmatprep.subr.bf16.mxu0 0
        %1262 = vmatpush1.bf16.msra.mxu0 %v1111
        %1263 = vmatprep.subr.bf16.mxu0 0
        %1264 = vmatpush1.bf16.msra.mxu0 %v1112
        %1265 = vmatprep.subr.bf16.mxu0 0
        %1266 = vmatpush1.bf16.msra.mxu0 0
        %1267 = vmatprep.subr.bf16.mxu0 0
        %1268 = vmatpush1.bf16.msra.mxu0 0
        %1269 = vmatprep.subr.bf16.mxu0 0
        %1270 = vmatpush1.bf16.msra.mxu0 0
        %1271 = vmatprep.subr.bf16.mxu0 0
        %1272 = vmatpush1.bf16.msra.mxu0 0
        %1273 = vmatprep.subr.bf16.mxu0 0
        %1274 = vmatpush1.bf16.msra.mxu0 0
        %1275 = vmatprep.subr.bf16.mxu0 0
        %1276 = vmatpush1.bf16.msra.mxu0 0
        %1277 = vmatprep.subr.bf16.mxu0 0
        %1278 = vmatpush1.bf16.msra.mxu0 0
        %1279 = vmatprep.subr.bf16.mxu0 0
        %1280 = vmatpush1.bf16.msra.mxu0 0
        %1281 = vmatprep.subr.bf16.mxu0 0
        %1282 = vmatpush1.bf16.msra.mxu0 0
        %1283 = vmatprep.subr.bf16.mxu0 0
        %1284 = vmatpush1.bf16.msra.mxu0 0
        %1285 = vmatprep.subr.bf16.mxu0 0
        %1286 = vmatpush1.bf16.msra.mxu0 0
        %1287 = vmatprep.subr.bf16.mxu0 0
        %1288 = vmatpush1.bf16.msra.mxu0 0
        %1289 = vmatprep.subr.bf16.mxu0 0
        %1290 = vmatpush1.bf16.msra.mxu0 0
        %1291 = vmatprep.subr.bf16.mxu0 0
        %1292 = vmatpush1.bf16.msra.mxu0 0
        %1293 = vmatprep.mubr.bf16.mxu0 0
        %1294 = vmatmul.mubr.bf16.gmra.mrb[0].mxu0 %v927
        %v1295 = vpop.f32.mrb[0].mxu0
        %v1296 = vadd.f32 %v1136, %v1295
        %v1297 = vpop.f32.mrb[0].mxu0
        %v1298 = vpop.f32.mrb[0].mxu0
        %v1299 = vpop.f32.mrb[0].mxu0
        %1300 = vdwg.mxu0
        %v1301 = vpack.c.bf16 %v749, %v749
        %v1302 = vpack.c.bf16 %v789, %v789
        %v1303 = vpack.c.bf16 %v829, %v829
        %v1304 = vpack.c.bf16 %v869, %v869
        %v1305 = vpack.c.bf16 %v964, %v964
        %v1306 = vpack.c.bf16 %v1004, %v1004
        %v1307 = vpack.c.bf16 %v1044, %v1044
        %v1308 = vpack.c.bf16 %v1084, %v1084
        %vm1309 = vcmask 64512
        %v1311 = vsel %vm1309, %v1301, 0
        %v1314 = vsel %vm1309, %v1305, 0
        %1316 = vmatprep.subr.bf16.mxu0 0
        %1317 = vmatpush1.bf16.xpose.msra.mxu0 %v1314
        %1318 = vmatprep.subr.bf16.mxu0 0
        %1319 = vmatpush1.bf16.xpose.msra.mxu0 0
        %1320 = vmatprep.subr.bf16.mxu0 0
        %1321 = vmatpush1.bf16.xpose.msra.mxu0 0
        %1322 = vmatprep.subr.bf16.mxu0 0
        %1323 = vmatpush1.bf16.xpose.msra.mxu0 0
        %1324 = vmatprep.subr.bf16.mxu0 0
        %1325 = vmatpush1.bf16.xpose.msra.mxu0 0
        %1326 = vmatprep.subr.bf16.mxu0 0
        %1327 = vmatpush1.bf16.xpose.msra.mxu0 0
        %1328 = vmatprep.subr.bf16.mxu0 0
        %1329 = vmatpush1.bf16.xpose.msra.mxu0 0
        %1330 = vmatprep.subr.bf16.mxu0 0
        %1331 = vmatpush1.bf16.xpose.msra.mxu0 0
        %1332 = vmatprep.subr.bf16.mxu0 0
        %1333 = vmatpush1.bf16.xpose.msra.mxu0 0
        %1334 = vmatprep.subr.bf16.mxu0 0
        %1335 = vmatpush1.bf16.xpose.msra.mxu0 0
        %1336 = vmatprep.subr.bf16.mxu0 0
        %1337 = vmatpush1.bf16.xpose.msra.mxu0 0
        %1338 = vmatprep.subr.bf16.mxu0 0
        %1339 = vmatpush1.bf16.xpose.msra.mxu0 0
        %1340 = vmatprep.subr.bf16.mxu0 0
        %1341 = vmatpush1.bf16.xpose.msra.mxu0 0
        %1342 = vmatprep.subr.bf16.mxu0 0
        %1343 = vmatpush1.bf16.xpose.msra.mxu0 0
        %1344 = vmatprep.subr.bf16.mxu0 0
        %1345 = vmatpush1.bf16.xpose.msra.mxu0 0
        %1346 = vmatprep.subr.bf16.mxu0 0
        %1347 = vmatpush1.bf16.xpose.msra.mxu0 0
        %1348 = vmatprep.mubr.bf16.mxu0 0
        %1349 = vmatmul.mubr.bf16.gmra.mrb[0].mxu0 %v1311
        %v1350 = vpop.f32.mrb[0].mxu0
        %v1351 = vadd.f32 0.0, %v1350
        %v1352 = vpop.f32.mrb[0].mxu0
        %v1353 = vpop.f32.mrb[0].mxu0
        %v1354 = vpop.f32.mrb[0].mxu0
        %1355 = vdwg.mxu0
        %v1357 = vsel %vm1309, %v1302, 0
        %v1360 = vsel %vm1309, %v1306, 0
        %1362 = vmatprep.subr.bf16.mxu0 0
        %1363 = vmatpush1.bf16.xpose.msra.mxu0 %v1360
        %1364 = vmatprep.subr.bf16.mxu0 0
        %1365 = vmatpush1.bf16.xpose.msra.mxu0 0
        %1366 = vmatprep.subr.bf16.mxu0 0
        %1367 = vmatpush1.bf16.xpose.msra.mxu0 0
        %1368 = vmatprep.subr.bf16.mxu0 0
        %1369 = vmatpush1.bf16.xpose.msra.mxu0 0
        %1370 = vmatprep.subr.bf16.mxu0 0
        %1371 = vmatpush1.bf16.xpose.msra.mxu0 0
        %1372 = vmatprep.subr.bf16.mxu0 0
        %1373 = vmatpush1.bf16.xpose.msra.mxu0 0
        %1374 = vmatprep.subr.bf16.mxu0 0
        %1375 = vmatpush1.bf16.xpose.msra.mxu0 0
        %1376 = vmatprep.subr.bf16.mxu0 0
        %1377 = vmatpush1.bf16.xpose.msra.mxu0 0
        %1378 = vmatprep.subr.bf16.mxu0 0
        %1379 = vmatpush1.bf16.xpose.msra.mxu0 0
        %1380 = vmatprep.subr.bf16.mxu0 0
        %1381 = vmatpush1.bf16.xpose.msra.mxu0 0
        %1382 = vmatprep.subr.bf16.mxu0 0
        %1383 = vmatpush1.bf16.xpose.msra.mxu0 0
        %1384 = vmatprep.subr.bf16.mxu0 0
        %1385 = vmatpush1.bf16.xpose.msra.mxu0 0
        %1386 = vmatprep.subr.bf16.mxu0 0
        %1387 = vmatpush1.bf16.xpose.msra.mxu0 0
        %1388 = vmatprep.subr.bf16.mxu0 0
        %1389 = vmatpush1.bf16.xpose.msra.mxu0 0
        %1390 = vmatprep.subr.bf16.mxu0 0
        %1391 = vmatpush1.bf16.xpose.msra.mxu0 0
        %1392 = vmatprep.subr.bf16.mxu0 0
        %1393 = vmatpush1.bf16.xpose.msra.mxu0 0
        %1394 = vmatprep.mubr.bf16.mxu0 0
        %1395 = vmatmul.mubr.bf16.gmra.mrb[0].mxu0 %v1357
        %v1396 = vpop.f32.mrb[0].mxu0
        %v1397 = vadd.f32 0.0, %v1396
        %v1398 = vpop.f32.mrb[0].mxu0
        %v1399 = vpop.f32.mrb[0].mxu0
        %v1400 = vpop.f32.mrb[0].mxu0
        %1401 = vdwg.mxu0
        %v1403 = vsel %vm1309, %v1303, 0
        %v1406 = vsel %vm1309, %v1307, 0
        %1408 = vmatprep.subr.bf16.mxu0 0
        %1409 = vmatpush1.bf16.xpose.msra.mxu0 %v1406
        %1410 = vmatprep.subr.bf16.mxu0 0
        %1411 = vmatpush1.bf16.xpose.msra.mxu0 0
        %1412 = vmatprep.subr.bf16.mxu0 0
        %1413 = vmatpush1.bf16.xpose.msra.mxu0 0
        %1414 = vmatprep.subr.bf16.mxu0 0
        %1415 = vmatpush1.bf16.xpose.msra.mxu0 0
        %1416 = vmatprep.subr.bf16.mxu0 0
        %1417 = vmatpush1.bf16.xpose.msra.mxu0 0
        %1418 = vmatprep.subr.bf16.mxu0 0
        %1419 = vmatpush1.bf16.xpose.msra.mxu0 0
        %1420 = vmatprep.subr.bf16.mxu0 0
        %1421 = vmatpush1.bf16.xpose.msra.mxu0 0
        %1422 = vmatprep.subr.bf16.mxu0 0
        %1423 = vmatpush1.bf16.xpose.msra.mxu0 0
        %1424 = vmatprep.subr.bf16.mxu0 0
        %1425 = vmatpush1.bf16.xpose.msra.mxu0 0
        %1426 = vmatprep.subr.bf16.mxu0 0
        %1427 = vmatpush1.bf16.xpose.msra.mxu0 0
        %1428 = vmatprep.subr.bf16.mxu0 0
        %1429 = vmatpush1.bf16.xpose.msra.mxu0 0
        %1430 = vmatprep.subr.bf16.mxu0 0
        %1431 = vmatpush1.bf16.xpose.msra.mxu0 0
        %1432 = vmatprep.subr.bf16.mxu0 0
        %1433 = vmatpush1.bf16.xpose.msra.mxu0 0
        %1434 = vmatprep.subr.bf16.mxu0 0
        %1435 = vmatpush1.bf16.xpose.msra.mxu0 0
        %1436 = vmatprep.subr.bf16.mxu0 0
        %1437 = vmatpush1.bf16.xpose.msra.mxu0 0
        %1438 = vmatprep.subr.bf16.mxu0 0
        %1439 = vmatpush1.bf16.xpose.msra.mxu0 0
        %1440 = vmatprep.mubr.bf16.mxu0 0
        %1441 = vmatmul.mubr.bf16.gmra.mrb[0].mxu0 %v1403
        %v1442 = vpop.f32.mrb[0].mxu0
        %v1443 = vadd.f32 0.0, %v1442
        %v1444 = vpop.f32.mrb[0].mxu0
        %v1445 = vpop.f32.mrb[0].mxu0
        %v1446 = vpop.f32.mrb[0].mxu0
        %1447 = vdwg.mxu0
        %v1449 = vsel %vm1309, %v1304, 0
        %v1452 = vsel %vm1309, %v1308, 0
        %1454 = vmatprep.subr.bf16.mxu0 0
        %1455 = vmatpush1.bf16.xpose.msra.mxu0 %v1452
        %1456 = vmatprep.subr.bf16.mxu0 0
        %1457 = vmatpush1.bf16.xpose.msra.mxu0 0
        %1458 = vmatprep.subr.bf16.mxu0 0
        %1459 = vmatpush1.bf16.xpose.msra.mxu0 0
        %1460 = vmatprep.subr.bf16.mxu0 0
        %1461 = vmatpush1.bf16.xpose.msra.mxu0 0
        %1462 = vmatprep.subr.bf16.mxu0 0
        %1463 = vmatpush1.bf16.xpose.msra.mxu0 0
        %1464 = vmatprep.subr.bf16.mxu0 0
        %1465 = vmatpush1.bf16.xpose.msra.mxu0 0
        %1466 = vmatprep.subr.bf16.mxu0 0
        %1467 = vmatpush1.bf16.xpose.msra.mxu0 0
        %1468 = vmatprep.subr.bf16.mxu0 0
        %1469 = vmatpush1.bf16.xpose.msra.mxu0 0
        %1470 = vmatprep.subr.bf16.mxu0 0
        %1471 = vmatpush1.bf16.xpose.msra.mxu0 0
        %1472 = vmatprep.subr.bf16.mxu0 0
        %1473 = vmatpush1.bf16.xpose.msra.mxu0 0
        %1474 = vmatprep.subr.bf16.mxu0 0
        %1475 = vmatpush1.bf16.xpose.msra.mxu0 0
        %1476 = vmatprep.subr.bf16.mxu0 0
        %1477 = vmatpush1.bf16.xpose.msra.mxu0 0
        %1478 = vmatprep.subr.bf16.mxu0 0
        %1479 = vmatpush1.bf16.xpose.msra.mxu0 0
        %1480 = vmatprep.subr.bf16.mxu0 0
        %1481 = vmatpush1.bf16.xpose.msra.mxu0 0
        %1482 = vmatprep.subr.bf16.mxu0 0
        %1483 = vmatpush1.bf16.xpose.msra.mxu0 0
        %1484 = vmatprep.subr.bf16.mxu0 0
        %1485 = vmatpush1.bf16.xpose.msra.mxu0 0
        %1486 = vmatprep.mubr.bf16.mxu0 0
        %1487 = vmatmul.mubr.bf16.gmra.mrb[0].mxu0 %v1449
        %v1488 = vpop.f32.mrb[0].mxu0
        %v1489 = vadd.f32 0.0, %v1488
        %v1490 = vpop.f32.mrb[0].mxu0
        %v1491 = vpop.f32.mrb[0].mxu0
        %v1492 = vpop.f32.mrb[0].mxu0
        %1493 = vdwg.mxu0
        %v1494 = vmul.f32 %v1351, 0.35355338
        %v1495 = vmul.f32 %v1397, 0.35355338
        %v1496 = vmul.f32 %v1443, 0.35355338
        %v1497 = vmul.f32 %v1489, 0.35355338
        %v1498 = vsel %vm1309, %v1494, -inf
        %1499 = vmax.xlane.f32.xlu0 %v1498
        %v1500 = vpop.xlane.xlu0 %1499
        %v1501 = vsel %vm1309, %v1495, -inf
        %1502 = vmax.xlane.f32.xlu0 %v1501
        %v1503 = vpop.xlane.xlu0 %1502
        %v1504 = vsel %vm1309, %v1496, -inf
        %1505 = vmax.xlane.f32.xlu0 %v1504
        %v1506 = vpop.xlane.xlu0 %1505
        %v1507 = vsel %vm1309, %v1497, -inf
        %1508 = vmax.xlane.f32.xlu0 %v1507
        %v1509 = vpop.xlane.xlu0 %1508
        %v1510 = vsub.f32 %v1494, %v1500
        %v1511 = vsub.f32 %v1495, %v1503
        %v1512 = vsub.f32 %v1496, %v1506
        %v1513 = vsub.f32 %v1497, %v1509
        %v1514 = vmul.f32 %v1510, 1.442695
        %v1515 = vpow.pop %v1514
        %v1516 = vmul.f32 %v1511, 1.442695
        %v1517 = vpow.pop %v1516
        %v1518 = vmul.f32 %v1512, 1.442695
        %v1519 = vpow.pop %v1518
        %v1520 = vmul.f32 %v1513, 1.442695
        %v1521 = vpow.pop %v1520
        %v1522 = vsel %vm1309, %v1515, 0.0
        %1523 = vadd.xlane.f32.xlu0 %v1522
        %v1524 = vpop.xlane.xlu0 %1523
        %v1525 = vsel %vm1309, %v1517, 0.0
        %1526 = vadd.xlane.f32.xlu0 %v1525
        %v1527 = vpop.xlane.xlu0 %1526
        %v1528 = vsel %vm1309, %v1519, 0.0
        %1529 = vadd.xlane.f32.xlu0 %v1528
        %v1530 = vpop.xlane.xlu0 %1529
        %v1531 = vsel %vm1309, %v1521, 0.0
        %1532 = vadd.xlane.f32.xlu0 %v1531
        %v1533 = vpop.xlane.xlu0 %1532
        %v1534 = vrcp.pop %v1524
        %v1535 = vrcp.pop %v1527
        %v1536 = vrcp.pop %v1530
        %v1537 = vrcp.pop %v1533
        %v1538 = vmul.f32 %v1515, %v1534
        %v1539 = vmul.f32 %v1517, %v1535
        %v1540 = vmul.f32 %v1519, %v1536
        %v1541 = vmul.f32 %v1521, %v1537
        %v1542 = vpack.c.bf16 %v1538, %v1538
        %v1543 = vpack.c.bf16 %v1539, %v1539
        %v1544 = vpack.c.bf16 %v1540, %v1540
        %v1545 = vpack.c.bf16 %v1541, %v1541
        %v1546 = vpack.c.bf16 %v1176, %v1176
        %v1547 = vpack.c.bf16 %v1216, %v1216
        %v1548 = vpack.c.bf16 %v1256, %v1256
        %v1549 = vpack.c.bf16 %v1296, %v1296
        %v1551 = vsel %vm1309, %v1542, 0
        %vm1553 = vcmask 1043456
        %v1555 = vsel %vm1553, %v1546, 0
        %1557 = vmatprep.subr.bf16.mxu0 0
        %1558 = vmatpush1.bf16.msra.mxu0 %v1555
        %1559 = vmatprep.subr.bf16.mxu0 0
        %1560 = vmatpush1.bf16.msra.mxu0 0
        %1561 = vmatprep.subr.bf16.mxu0 0
        %1562 = vmatpush1.bf16.msra.mxu0 0
        %1563 = vmatprep.subr.bf16.mxu0 0
        %1564 = vmatpush1.bf16.msra.mxu0 0
        %1565 = vmatprep.subr.bf16.mxu0 0
        %1566 = vmatpush1.bf16.msra.mxu0 0
        %1567 = vmatprep.subr.bf16.mxu0 0
        %1568 = vmatpush1.bf16.msra.mxu0 0
        %1569 = vmatprep.subr.bf16.mxu0 0
        %1570 = vmatpush1.bf16.msra.mxu0 0
        %1571 = vmatprep.subr.bf16.mxu0 0
        %1572 = vmatpush1.bf16.msra.mxu0 0
        %1573 = vmatprep.subr.bf16.mxu0 0
        %1574 = vmatpush1.bf16.msra.mxu0 0
        %1575 = vmatprep.subr.bf16.mxu0 0
        %1576 = vmatpush1.bf16.msra.mxu0 0
        %1577 = vmatprep.subr.bf16.mxu0 0
        %1578 = vmatpush1.bf16.msra.mxu0 0
        %1579 = vmatprep.subr.bf16.mxu0 0
        %1580 = vmatpush1.bf16.msra.mxu0 0
        %1581 = vmatprep.subr.bf16.mxu0 0
        %1582 = vmatpush1.bf16.msra.mxu0 0
        %1583 = vmatprep.subr.bf16.mxu0 0
        %1584 = vmatpush1.bf16.msra.mxu0 0
        %1585 = vmatprep.subr.bf16.mxu0 0
        %1586 = vmatpush1.bf16.msra.mxu0 0
        %1587 = vmatprep.subr.bf16.mxu0 0
        %1588 = vmatpush1.bf16.msra.mxu0 0
        %1589 = vmatprep.mubr.bf16.mxu0 0
        %1590 = vmatmul.mubr.bf16.gmra.mrb[0].mxu0 %v1551
        %v1591 = vpop.f32.mrb[0].mxu0
        %v1592 = vadd.f32 0.0, %v1591
        %v1593 = vpop.f32.mrb[0].mxu0
        %v1594 = vpop.f32.mrb[0].mxu0
        %v1595 = vpop.f32.mrb[0].mxu0
        %1596 = vdwg.mxu0
        %v1598 = vsel %vm1309, %v1543, 0
        %v1601 = vsel %vm1553, %v1547, 0
        %1603 = vmatprep.subr.bf16.mxu0 0
        %1604 = vmatpush1.bf16.msra.mxu0 %v1601
        %1605 = vmatprep.subr.bf16.mxu0 0
        %1606 = vmatpush1.bf16.msra.mxu0 0
        %1607 = vmatprep.subr.bf16.mxu0 0
        %1608 = vmatpush1.bf16.msra.mxu0 0
        %1609 = vmatprep.subr.bf16.mxu0 0
        %1610 = vmatpush1.bf16.msra.mxu0 0
        %1611 = vmatprep.subr.bf16.mxu0 0
        %1612 = vmatpush1.bf16.msra.mxu0 0
        %1613 = vmatprep.subr.bf16.mxu0 0
        %1614 = vmatpush1.bf16.msra.mxu0 0
        %1615 = vmatprep.subr.bf16.mxu0 0
        %1616 = vmatpush1.bf16.msra.mxu0 0
        %1617 = vmatprep.subr.bf16.mxu0 0
        %1618 = vmatpush1.bf16.msra.mxu0 0
        %1619 = vmatprep.subr.bf16.mxu0 0
        %1620 = vmatpush1.bf16.msra.mxu0 0
        %1621 = vmatprep.subr.bf16.mxu0 0
        %1622 = vmatpush1.bf16.msra.mxu0 0
        %1623 = vmatprep.subr.bf16.mxu0 0
        %1624 = vmatpush1.bf16.msra.mxu0 0
        %1625 = vmatprep.subr.bf16.mxu0 0
        %1626 = vmatpush1.bf16.msra.mxu0 0
        %1627 = vmatprep.subr.bf16.mxu0 0
        %1628 = vmatpush1.bf16.msra.mxu0 0
        %1629 = vmatprep.subr.bf16.mxu0 0
        %1630 = vmatpush1.bf16.msra.mxu0 0
        %1631 = vmatprep.subr.bf16.mxu0 0
        %1632 = vmatpush1.bf16.msra.mxu0 0
        %1633 = vmatprep.subr.bf16.mxu0 0
        %1634 = vmatpush1.bf16.msra.mxu0 0
        %1635 = vmatprep.mubr.bf16.mxu0 0
        %1636 = vmatmul.mubr.bf16.gmra.mrb[0].mxu0 %v1598
        %v1637 = vpop.f32.mrb[0].mxu0
        %v1638 = vadd.f32 0.0, %v1637
        %v1639 = vpop.f32.mrb[0].mxu0
        %v1640 = vpop.f32.mrb[0].mxu0
        %v1641 = vpop.f32.mrb[0].mxu0
        %1642 = vdwg.mxu0
        %v1644 = vsel %vm1309, %v1544, 0
        %v1647 = vsel %vm1553, %v1548, 0
        %1649 = vmatprep.subr.bf16.mxu0 0
        %1650 = vmatpush1.bf16.msra.mxu0 %v1647
        %1651 = vmatprep.subr.bf16.mxu0 0
        %1652 = vmatpush1.bf16.msra.mxu0 0
        %1653 = vmatprep.subr.bf16.mxu0 0
        %1654 = vmatpush1.bf16.msra.mxu0 0
        %1655 = vmatprep.subr.bf16.mxu0 0
        %1656 = vmatpush1.bf16.msra.mxu0 0
        %1657 = vmatprep.subr.bf16.mxu0 0
        %1658 = vmatpush1.bf16.msra.mxu0 0
        %1659 = vmatprep.subr.bf16.mxu0 0
        %1660 = vmatpush1.bf16.msra.mxu0 0
        %1661 = vmatprep.subr.bf16.mxu0 0
        %1662 = vmatpush1.bf16.msra.mxu0 0
        %1663 = vmatprep.subr.bf16.mxu0 0
        %1664 = vmatpush1.bf16.msra.mxu0 0
        %1665 = vmatprep.subr.bf16.mxu0 0
        %1666 = vmatpush1.bf16.msra.mxu0 0
        %1667 = vmatprep.subr.bf16.mxu0 0
        %1668 = vmatpush1.bf16.msra.mxu0 0
        %1669 = vmatprep.subr.bf16.mxu0 0
        %1670 = vmatpush1.bf16.msra.mxu0 0
        %1671 = vmatprep.subr.bf16.mxu0 0
        %1672 = vmatpush1.bf16.msra.mxu0 0
        %1673 = vmatprep.subr.bf16.mxu0 0
        %1674 = vmatpush1.bf16.msra.mxu0 0
        %1675 = vmatprep.subr.bf16.mxu0 0
        %1676 = vmatpush1.bf16.msra.mxu0 0
        %1677 = vmatprep.subr.bf16.mxu0 0
        %1678 = vmatpush1.bf16.msra.mxu0 0
        %1679 = vmatprep.subr.bf16.mxu0 0
        %1680 = vmatpush1.bf16.msra.mxu0 0
        %1681 = vmatprep.mubr.bf16.mxu0 0
        %1682 = vmatmul.mubr.bf16.gmra.mrb[0].mxu0 %v1644
        %v1683 = vpop.f32.mrb[0].mxu0
        %v1684 = vadd.f32 0.0, %v1683
        %v1685 = vpop.f32.mrb[0].mxu0
        %v1686 = vpop.f32.mrb[0].mxu0
        %v1687 = vpop.f32.mrb[0].mxu0
        %1688 = vdwg.mxu0
        %v1690 = vsel %vm1309, %v1545, 0
        %v1693 = vsel %vm1553, %v1549, 0
        %1695 = vmatprep.subr.bf16.mxu0 0
        %1696 = vmatpush1.bf16.msra.mxu0 %v1693
        %1697 = vmatprep.subr.bf16.mxu0 0
        %1698 = vmatpush1.bf16.msra.mxu0 0
        %1699 = vmatprep.subr.bf16.mxu0 0
        %1700 = vmatpush1.bf16.msra.mxu0 0
        %1701 = vmatprep.subr.bf16.mxu0 0
        %1702 = vmatpush1.bf16.msra.mxu0 0
        %1703 = vmatprep.subr.bf16.mxu0 0
        %1704 = vmatpush1.bf16.msra.mxu0 0
        %1705 = vmatprep.subr.bf16.mxu0 0
        %1706 = vmatpush1.bf16.msra.mxu0 0
        %1707 = vmatprep.subr.bf16.mxu0 0
        %1708 = vmatpush1.bf16.msra.mxu0 0
        %1709 = vmatprep.subr.bf16.mxu0 0
        %1710 = vmatpush1.bf16.msra.mxu0 0
        %1711 = vmatprep.subr.bf16.mxu0 0
        %1712 = vmatpush1.bf16.msra.mxu0 0
        %1713 = vmatprep.subr.bf16.mxu0 0
        %1714 = vmatpush1.bf16.msra.mxu0 0
        %1715 = vmatprep.subr.bf16.mxu0 0
        %1716 = vmatpush1.bf16.msra.mxu0 0
        %1717 = vmatprep.subr.bf16.mxu0 0
        %1718 = vmatpush1.bf16.msra.mxu0 0
        %1719 = vmatprep.subr.bf16.mxu0 0
        %1720 = vmatpush1.bf16.msra.mxu0 0
        %1721 = vmatprep.subr.bf16.mxu0 0
        %1722 = vmatpush1.bf16.msra.mxu0 0
        %1723 = vmatprep.subr.bf16.mxu0 0
        %1724 = vmatpush1.bf16.msra.mxu0 0
        %1725 = vmatprep.subr.bf16.mxu0 0
        %1726 = vmatpush1.bf16.msra.mxu0 0
        %1727 = vmatprep.mubr.bf16.mxu0 0
        %1728 = vmatmul.mubr.bf16.gmra.mrb[0].mxu0 %v1690
        %v1729 = vpop.f32.mrb[0].mxu0
        %v1730 = vadd.f32 0.0, %v1729
        %v1731 = vpop.f32.mrb[0].mxu0
        %v1732 = vpop.f32.mrb[0].mxu0
        %v1733 = vpop.f32.mrb[0].mxu0
        %1734 = vdwg.mxu0
        %v1735 = vpack.c.bf16 %v1592, %v1592
        %v1736 = vpack.c.bf16 %v1638, %v1638
        %v1737 = vpack.c.bf16 %v1684, %v1684
        %v1738 = vpack.c.bf16 %v1730, %v1730
        %v1739 = vld [vmem:[%s8] sm:$0xff]
        %v1740 = vld [vmem:[%s8 + $0x8] sm:$0xff]
        %v1741 = vld [vmem:[%s8 + $0x10] sm:$0xff]
        %v1742 = vld [vmem:[%s8 + $0x18] sm:$0xff]
        %v1743 = vpack.c.bf16 %v1739, %v1739
        %v1744 = vpack.c.bf16 %v1740, %v1740
        %v1745 = vpack.c.bf16 %v1741, %v1741
        %v1746 = vpack.c.bf16 %v1742, %v1742
        %v1748 = vsel %vm1309, %v1735, 0
        %v1751 = vsel %vm1553, %v1743, 0
        %1753 = vmatprep.subr.bf16.mxu0 0
        %1754 = vmatpush1.bf16.msra.mxu0 %v1751
        %1755 = vmatprep.subr.bf16.mxu0 0
        %1756 = vmatpush1.bf16.msra.mxu0 0
        %1757 = vmatprep.subr.bf16.mxu0 0
        %1758 = vmatpush1.bf16.msra.mxu0 0
        %1759 = vmatprep.subr.bf16.mxu0 0
        %1760 = vmatpush1.bf16.msra.mxu0 0
        %1761 = vmatprep.subr.bf16.mxu0 0
        %1762 = vmatpush1.bf16.msra.mxu0 0
        %1763 = vmatprep.subr.bf16.mxu0 0
        %1764 = vmatpush1.bf16.msra.mxu0 0
        %1765 = vmatprep.subr.bf16.mxu0 0
        %1766 = vmatpush1.bf16.msra.mxu0 0
        %1767 = vmatprep.subr.bf16.mxu0 0
        %1768 = vmatpush1.bf16.msra.mxu0 0
        %1769 = vmatprep.subr.bf16.mxu0 0
        %1770 = vmatpush1.bf16.msra.mxu0 0
        %1771 = vmatprep.subr.bf16.mxu0 0
        %1772 = vmatpush1.bf16.msra.mxu0 0
        %1773 = vmatprep.subr.bf16.mxu0 0
        %1774 = vmatpush1.bf16.msra.mxu0 0
        %1775 = vmatprep.subr.bf16.mxu0 0
        %1776 = vmatpush1.bf16.msra.mxu0 0
        %1777 = vmatprep.subr.bf16.mxu0 0
        %1778 = vmatpush1.bf16.msra.mxu0 0
        %1779 = vmatprep.subr.bf16.mxu0 0
        %1780 = vmatpush1.bf16.msra.mxu0 0
        %1781 = vmatprep.subr.bf16.mxu0 0
        %1782 = vmatpush1.bf16.msra.mxu0 0
        %1783 = vmatprep.subr.bf16.mxu0 0
        %1784 = vmatpush1.bf16.msra.mxu0 0
        %1785 = vmatprep.mubr.bf16.mxu0 0
        %1786 = vmatmul.mubr.bf16.gmra.mrb[0].mxu0 %v1748
        %v1787 = vpop.f32.mrb[0].mxu0
        %v1788 = vadd.f32 0.0, %v1787
        %v1789 = vpop.f32.mrb[0].mxu0
        %v1790 = vpop.f32.mrb[0].mxu0
        %v1791 = vpop.f32.mrb[0].mxu0
        %1792 = vdwg.mxu0
        %v1794 = vsel %vm1309, %v1736, 0
        %v1797 = vsel %vm1553, %v1744, 0
        %1799 = vmatprep.subr.bf16.mxu0 0
        %1800 = vmatpush1.bf16.msra.mxu0 %v1797
        %1801 = vmatprep.subr.bf16.mxu0 0
        %1802 = vmatpush1.bf16.msra.mxu0 0
        %1803 = vmatprep.subr.bf16.mxu0 0
        %1804 = vmatpush1.bf16.msra.mxu0 0
        %1805 = vmatprep.subr.bf16.mxu0 0
        %1806 = vmatpush1.bf16.msra.mxu0 0
        %1807 = vmatprep.subr.bf16.mxu0 0
        %1808 = vmatpush1.bf16.msra.mxu0 0
        %1809 = vmatprep.subr.bf16.mxu0 0
        %1810 = vmatpush1.bf16.msra.mxu0 0
        %1811 = vmatprep.subr.bf16.mxu0 0
        %1812 = vmatpush1.bf16.msra.mxu0 0
        %1813 = vmatprep.subr.bf16.mxu0 0
        %1814 = vmatpush1.bf16.msra.mxu0 0
        %1815 = vmatprep.subr.bf16.mxu0 0
        %1816 = vmatpush1.bf16.msra.mxu0 0
        %1817 = vmatprep.subr.bf16.mxu0 0
        %1818 = vmatpush1.bf16.msra.mxu0 0
        %1819 = vmatprep.subr.bf16.mxu0 0
        %1820 = vmatpush1.bf16.msra.mxu0 0
        %1821 = vmatprep.subr.bf16.mxu0 0
        %1822 = vmatpush1.bf16.msra.mxu0 0
        %1823 = vmatprep.subr.bf16.mxu0 0
        %1824 = vmatpush1.bf16.msra.mxu0 0
        %1825 = vmatprep.subr.bf16.mxu0 0
        %1826 = vmatpush1.bf16.msra.mxu0 0
        %1827 = vmatprep.subr.bf16.mxu0 0
        %1828 = vmatpush1.bf16.msra.mxu0 0
        %1829 = vmatprep.subr.bf16.mxu0 0
        %1830 = vmatpush1.bf16.msra.mxu0 0
        %1831 = vmatprep.mubr.bf16.mxu0 0
        %1832 = vmatmul.mubr.bf16.gmra.mrb[0].mxu0 %v1794
        %v1833 = vpop.f32.mrb[0].mxu0
        %v1834 = vadd.f32 0.0, %v1833
        %v1835 = vpop.f32.mrb[0].mxu0
        %v1836 = vpop.f32.mrb[0].mxu0
        %v1837 = vpop.f32.mrb[0].mxu0
        %1838 = vdwg.mxu0
        %v1840 = vsel %vm1309, %v1737, 0
        %v1843 = vsel %vm1553, %v1745, 0
        %1845 = vmatprep.subr.bf16.mxu0 0
        %1846 = vmatpush1.bf16.msra.mxu0 %v1843
        %1847 = vmatprep.subr.bf16.mxu0 0
        %1848 = vmatpush1.bf16.msra.mxu0 0
        %1849 = vmatprep.subr.bf16.mxu0 0
        %1850 = vmatpush1.bf16.msra.mxu0 0
        %1851 = vmatprep.subr.bf16.mxu0 0
        %1852 = vmatpush1.bf16.msra.mxu0 0
        %1853 = vmatprep.subr.bf16.mxu0 0
        %1854 = vmatpush1.bf16.msra.mxu0 0
        %1855 = vmatprep.subr.bf16.mxu0 0
        %1856 = vmatpush1.bf16.msra.mxu0 0
        %1857 = vmatprep.subr.bf16.mxu0 0
        %1858 = vmatpush1.bf16.msra.mxu0 0
        %1859 = vmatprep.subr.bf16.mxu0 0
        %1860 = vmatpush1.bf16.msra.mxu0 0
        %1861 = vmatprep.subr.bf16.mxu0 0
        %1862 = vmatpush1.bf16.msra.mxu0 0
        %1863 = vmatprep.subr.bf16.mxu0 0
        %1864 = vmatpush1.bf16.msra.mxu0 0
        %1865 = vmatprep.subr.bf16.mxu0 0
        %1866 = vmatpush1.bf16.msra.mxu0 0
        %1867 = vmatprep.subr.bf16.mxu0 0
        %1868 = vmatpush1.bf16.msra.mxu0 0
        %1869 = vmatprep.subr.bf16.mxu0 0
        %1870 = vmatpush1.bf16.msra.mxu0 0
        %1871 = vmatprep.subr.bf16.mxu0 0
        %1872 = vmatpush1.bf16.msra.mxu0 0
        %1873 = vmatprep.subr.bf16.mxu0 0
        %1874 = vmatpush1.bf16.msra.mxu0 0
        %1875 = vmatprep.subr.bf16.mxu0 0
        %1876 = vmatpush1.bf16.msra.mxu0 0
        %1877 = vmatprep.mubr.bf16.mxu0 0
        %1878 = vmatmul.mubr.bf16.gmra.mrb[0].mxu0 %v1840
        %v1879 = vpop.f32.mrb[0].mxu0
        %v1880 = vadd.f32 0.0, %v1879
        %v1881 = vpop.f32.mrb[0].mxu0
        %v1882 = vpop.f32.mrb[0].mxu0
        %v1883 = vpop.f32.mrb[0].mxu0
        %1884 = vdwg.mxu0
        %v1886 = vsel %vm1309, %v1738, 0
        %v1889 = vsel %vm1553, %v1746, 0
        %1891 = vmatprep.subr.bf16.mxu0 0
        %1892 = vmatpush1.bf16.msra.mxu0 %v1889
        %1893 = vmatprep.subr.bf16.mxu0 0
        %1894 = vmatpush1.bf16.msra.mxu0 0
        %1895 = vmatprep.subr.bf16.mxu0 0
        %1896 = vmatpush1.bf16.msra.mxu0 0
        %1897 = vmatprep.subr.bf16.mxu0 0
        %1898 = vmatpush1.bf16.msra.mxu0 0
        %1899 = vmatprep.subr.bf16.mxu0 0
        %1900 = vmatpush1.bf16.msra.mxu0 0
        %1901 = vmatprep.subr.bf16.mxu0 0
        %1902 = vmatpush1.bf16.msra.mxu0 0
        %1903 = vmatprep.subr.bf16.mxu0 0
        %1904 = vmatpush1.bf16.msra.mxu0 0
        %1905 = vmatprep.subr.bf16.mxu0 0
        %1906 = vmatpush1.bf16.msra.mxu0 0
        %1907 = vmatprep.subr.bf16.mxu0 0
        %1908 = vmatpush1.bf16.msra.mxu0 0
        %1909 = vmatprep.subr.bf16.mxu0 0
        %1910 = vmatpush1.bf16.msra.mxu0 0
        %1911 = vmatprep.subr.bf16.mxu0 0
        %1912 = vmatpush1.bf16.msra.mxu0 0
        %1913 = vmatprep.subr.bf16.mxu0 0
        %1914 = vmatpush1.bf16.msra.mxu0 0
        %1915 = vmatprep.subr.bf16.mxu0 0
        %1916 = vmatpush1.bf16.msra.mxu0 0
        %1917 = vmatprep.subr.bf16.mxu0 0
        %1918 = vmatpush1.bf16.msra.mxu0 0
        %1919 = vmatprep.subr.bf16.mxu0 0
        %1920 = vmatpush1.bf16.msra.mxu0 0
        %1921 = vmatprep.subr.bf16.mxu0 0
        %1922 = vmatpush1.bf16.msra.mxu0 0
        %1923 = vmatprep.mubr.bf16.mxu0 0
        %1924 = vmatmul.mubr.bf16.gmra.mrb[0].mxu0 %v1886
        %v1925 = vpop.f32.mrb[0].mxu0
        %v1926 = vadd.f32 0.0, %v1925
        %v1927 = vpop.f32.mrb[0].mxu0
        %v1928 = vpop.f32.mrb[0].mxu0
        %v1929 = vpop.f32.mrb[0].mxu0
        %1930 = vdwg.mxu0
        %v1931 = vsel %vm710, %v1788, 0.0
        %v1932 = vsel %vm710, %v1834, 0.0
        %v1933 = vadd.f32 %v1931, %v1932
        %v1934 = vsel %vm710, %v1880, 0.0
        %v1935 = vadd.f32 %v1933, %v1934
        %v1936 = vsel %vm710, %v1926, 0.0
        %v1937 = vadd.f32 %v1935, %v1936
        %v1938 = vld [vmem:[%s9] sm:$0x1]
        %v1940 = vlaneseq
        %v1941 = vshrl.u32 %v1940, 7
        %v1942 = vsub.s32 0, %v1941
        %v1943 = vrot.slane %v1938, %v1942
        %v1945 = vadd.f32 %v1937, %v1943
        %v1946 = vadd.f32 %v1945, %v654
        %v1947 = vld [vmem:[%s10] sm:$0x1]
        %v1948 = vld [vmem:[%s11] sm:$0x1]
        %v1949 = vsel %vm710, %v1946, 0.0
        %1950 = vadd.xlane.f32.xlu0 %v1949
        %v1951 = vpop.xlane.xlu0 %1950
        %v1952 = vrcp.pop 32.0
        %v1953 = vmul.f32 %v1951, %v1952
        %v1954 = vsub.f32 %v1946, %v1953
        %v1955 = vmul.f32 %v1954, %v1954
        %v1956 = vsel %vm710, %v1955, 0.0
        %1957 = vadd.xlane.f32.xlu0 %v1956
        %v1958 = vpop.xlane.xlu0 %1957
        %v1959 = vmul.f32 %v1958, %v1952
        %v1960 = vadd.f32 %v1959, 1e-05
        %v1961 = vrsqrt.pop %v1960
        %v1962 = vmul.f32 %v1954, %v1961
        %v1964 = vlaneseq
        %v1965 = vshrl.u32 %v1964, 7
        %v1966 = vsub.s32 0, %v1965
        %v1967 = vrot.slane %v1947, %v1966
        %v1969 = vmul.f32 %v1962, %v1967
        %v1971 = vlaneseq
        %v1972 = vshrl.u32 %v1971, 7
        %v1973 = vsub.s32 0, %v1972
        %v1974 = vrot.slane %v1948, %v1973
        %v1976 = vadd.f32 %v1969, %v1974
        %v1977 = vpack.c.bf16 %v1976, %v1976
        %v1978 = vld [vmem:[%s12] sm:$0xff]
        %v1979 = vld [vmem:[%s12 + $0x8] sm:$0xff]
        %v1980 = vld [vmem:[%s12 + $0x10] sm:$0xff]
        %v1981 = vld [vmem:[%s12 + $0x18] sm:$0xff]
        %v1982 = vpack.c.bf16 %v1979, %v1978
        %v1983 = vpack.c.bf16 %v1981, %v1980
        %v1984 = vld [vmem:[%s13] sm:$0x1]
        %v1986 = vlaneseq
        %v1987 = vshrl.u32 %v1986, 7
        %v1988 = vsub.s32 0, %v1987
        %v1989 = vrot.slane %v1984, %v1988
        %v1992 = vsel %vm710, %v1977, 0
        %1994 = vmatprep.subr.bf16.mxu0 0
        %1995 = vmatpush1.bf16.msra.mxu0 %v1982
        %1996 = vmatprep.subr.bf16.mxu0 0
        %1997 = vmatpush1.bf16.msra.mxu0 %v1983
        %1998 = vmatprep.subr.bf16.mxu0 0
        %1999 = vmatpush1.bf16.msra.mxu0 0
        %2000 = vmatprep.subr.bf16.mxu0 0
        %2001 = vmatpush1.bf16.msra.mxu0 0
        %2002 = vmatprep.subr.bf16.mxu0 0
        %2003 = vmatpush1.bf16.msra.mxu0 0
        %2004 = vmatprep.subr.bf16.mxu0 0
        %2005 = vmatpush1.bf16.msra.mxu0 0
        %2006 = vmatprep.subr.bf16.mxu0 0
        %2007 = vmatpush1.bf16.msra.mxu0 0
        %2008 = vmatprep.subr.bf16.mxu0 0
        %2009 = vmatpush1.bf16.msra.mxu0 0
        %2010 = vmatprep.subr.bf16.mxu0 0
        %2011 = vmatpush1.bf16.msra.mxu0 0
        %2012 = vmatprep.subr.bf16.mxu0 0
        %2013 = vmatpush1.bf16.msra.mxu0 0
        %2014 = vmatprep.subr.bf16.mxu0 0
        %2015 = vmatpush1.bf16.msra.mxu0 0
        %2016 = vmatprep.subr.bf16.mxu0 0
        %2017 = vmatpush1.bf16.msra.mxu0 0
        %2018 = vmatprep.subr.bf16.mxu0 0
        %2019 = vmatpush1.bf16.msra.mxu0 0
        %2020 = vmatprep.subr.bf16.mxu0 0
        %2021 = vmatpush1.bf16.msra.mxu0 0
        %2022 = vmatprep.subr.bf16.mxu0 0
        %2023 = vmatpush1.bf16.msra.mxu0 0
        %2024 = vmatprep.subr.bf16.mxu0 0
        %2025 = vmatpush1.bf16.msra.mxu0 0
        %2026 = vmatprep.mubr.bf16.mxu0 0
        %2027 = vmatmul.mubr.bf16.gmra.mrb[0].mxu0 %v1992
        %v2028 = vpop.f32.mrb[0].mxu0
        %v2029 = vadd.f32 %v1989, %v2028
        %v2030 = vpop.f32.mrb[0].mxu0
        %v2031 = vpop.f32.mrb[0].mxu0
        %v2032 = vpop.f32.mrb[0].mxu0
        %2033 = vdwg.mxu0
        %v2034 = vmax.f32 %v2029, 0.0
        %v2035 = vpack.c.bf16 %v2034, %v2034
        %v2036 = vld [vmem:[%s14] sm:$0xff]
        %v2037 = vld [vmem:[%s14 + $0x8] sm:$0xff]
        %v2038 = vld [vmem:[%s14 + $0x10] sm:$0xff]
        %v2039 = vld [vmem:[%s14 + $0x18] sm:$0xff]
        %v2040 = vld [vmem:[%s14 + $0x20] sm:$0xff]
        %v2041 = vld [vmem:[%s14 + $0x28] sm:$0xff]
        %v2042 = vld [vmem:[%s14 + $0x30] sm:$0xff]
        %v2043 = vld [vmem:[%s14 + $0x38] sm:$0xff]
        %v2044 = vpack.c.bf16 %v2037, %v2036
        %v2045 = vpack.c.bf16 %v2039, %v2038
        %v2046 = vpack.c.bf16 %v2041, %v2040
        %v2047 = vpack.c.bf16 %v2043, %v2042
        %v2048 = vld [vmem:[%s15] sm:$0x1]
        %v2050 = vlaneseq
        %v2051 = vshrl.u32 %v2050, 7
        %v2052 = vsub.s32 0, %v2051
        %v2053 = vrot.slane %v2048, %v2052
        %vm2055 = vcmask 523264
        %v2057 = vsel %vm2055, %v2035, 0
        %2059 = vmatprep.subr.bf16.mxu0 0
        %2060 = vmatpush1.bf16.msra.mxu0 %v2044
        %2061 = vmatprep.subr.bf16.mxu0 0
        %2062 = vmatpush1.bf16.msra.mxu0 %v2045
        %2063 = vmatprep.subr.bf16.mxu0 0
        %2064 = vmatpush1.bf16.msra.mxu0 %v2046
        %2065 = vmatprep.subr.bf16.mxu0 0
        %2066 = vmatpush1.bf16.msra.mxu0 %v2047
        %2067 = vmatprep.subr.bf16.mxu0 0
        %2068 = vmatpush1.bf16.msra.mxu0 0
        %2069 = vmatprep.subr.bf16.mxu0 0
        %2070 = vmatpush1.bf16.msra.mxu0 0
        %2071 = vmatprep.subr.bf16.mxu0 0
        %2072 = vmatpush1.bf16.msra.mxu0 0
        %2073 = vmatprep.subr.bf16.mxu0 0
        %2074 = vmatpush1.bf16.msra.mxu0 0
        %2075 = vmatprep.subr.bf16.mxu0 0
        %2076 = vmatpush1.bf16.msra.mxu0 0
        %2077 = vmatprep.subr.bf16.mxu0 0
        %2078 = vmatpush1.bf16.msra.mxu0 0
        %2079 = vmatprep.subr.bf16.mxu0 0
        %2080 = vmatpush1.bf16.msra.mxu0 0
        %2081 = vmatprep.subr.bf16.mxu0 0
        %2082 = vmatpush1.bf16.msra.mxu0 0
        %2083 = vmatprep.subr.bf16.mxu0 0
        %2084 = vmatpush1.bf16.msra.mxu0 0
        %2085 = vmatprep.subr.bf16.mxu0 0
        %2086 = vmatpush1.bf16.msra.mxu0 0
        %2087 = vmatprep.subr.bf16.mxu0 0
        %2088 = vmatpush1.bf16.msra.mxu0 0
        %2089 = vmatprep.subr.bf16.mxu0 0
        %2090 = vmatpush1.bf16.msra.mxu0 0
        %2091 = vmatprep.mubr.bf16.mxu0 0
        %2092 = vmatmul.mubr.bf16.gmra.mrb[0].mxu0 %v2057
        %v2093 = vpop.f32.mrb[0].mxu0
        %v2094 = vadd.f32 %v2053, %v2093
        %v2095 = vpop.f32.mrb[0].mxu0
        %v2096 = vpop.f32.mrb[0].mxu0
        %v2097 = vpop.f32.mrb[0].mxu0
        %2098 = vdwg.mxu0
        %v2099 = vadd.f32 %v2094, %v1976
        %v2100 = vld [vmem:[%s16] sm:$0x1]
        %v2101 = vld [vmem:[%s17] sm:$0x1]
        %v2102 = vsel %vm710, %v2099, 0.0
        %2103 = vadd.xlane.f32.xlu0 %v2102
        %v2104 = vpop.xlane.xlu0 %2103
        %v2105 = vmul.f32 %v2104, %v1952
        %v2106 = vsub.f32 %v2099, %v2105
        %v2107 = vmul.f32 %v2106, %v2106
        %v2108 = vsel %vm710, %v2107, 0.0
        %2109 = vadd.xlane.f32.xlu0 %v2108
        %v2110 = vpop.xlane.xlu0 %2109
        %v2111 = vmul.f32 %v2110, %v1952
        %v2112 = vadd.f32 %v2111, 1e-05
        %v2113 = vrsqrt.pop %v2112
        %v2114 = vmul.f32 %v2106, %v2113
        %v2116 = vlaneseq
        %v2117 = vshrl.u32 %v2116, 7
        %v2118 = vsub.s32 0, %v2117
        %v2119 = vrot.slane %v2100, %v2118
        %v2121 = vmul.f32 %v2114, %v2119
        %v2123 = vlaneseq
        %v2124 = vshrl.u32 %v2123, 7
        %v2125 = vsub.s32 0, %v2124
        %v2126 = vrot.slane %v2101, %v2125
        %v2128 = vadd.f32 %v2121, %v2126
        %2129 = vst.msk [vmem:[%s634] sm:$0xff] %vm710, %v2128
        %2130 = vst.msk [vmem:[%s641] sm:$0xff] %vm1309, %v1538
        %2131 = vst.msk [vmem:[%s641 + $0x8] sm:$0xff] %vm1309, %v1539
        %2132 = vst.msk [vmem:[%s641 + $0x10] sm:$0xff] %vm1309, %v1540
        %2133 = vst.msk [vmem:[%s641 + $0x18] sm:$0xff] %vm1309, %v1541
        %s2134 = sand.u32 %s449, 1
        %s2135 = scalar_lea.sflag [#allocation3], %s2134
        %s2136 = sand.u32 %s449, 1
        %s2137 = smul.addr %s2136, 8
        %s2138 = scalar_lea.vmem [#allocation2], %s2137
        %s2139 = sand.u32 %s477, 1
        %s2140 = scalar_lea.sflag [#allocation5], %s2139
        %s2141 = sand.u32 %s477, 1
        %s2142 = smul.addr %s2141, 32
        %s2143 = scalar_lea.vmem [#allocation4], %s2142
        // Predicated region
        $region93: #{tpu_custom_call.1} parent=91 // pred_check
          %p2144 = pneg %p459
        $region94: #{tpu_custom_call.1} parent=91 // pred_check_branch
          %2146 = sbr.rel (%p2144) target = $region96
        $region95: #{tpu_custom_call.1} parent=91 // pred_region
          %s2148 = ssub.s32 128, 128
          %2149 = vsyncadd %s2135, %s2148
          %s2150 = sadd.s32 %s42, %s41
          %s2151 = smul.addr %s2150, 128
          %s2152 = scalar_lea.hbm %s18, %s2151
          %s2154 = sshll.u32 %s2138, 4
          %s2155 = int_to_ptr.vmem [resolvable:$true] %s2154
          %2157 = dma.vmem_to_hbm [thread:$0]  %s2155, 128, %s2152, %s2135
        $region96: #{tpu_custom_call.1} parent=91 // pred_fallthru
          _
        // Predicated region
        $region97: #{tpu_custom_call.1} parent=91 // pred_check
          %p2158 = pneg %p487
        $region98: #{tpu_custom_call.1} parent=91 // pred_check_branch
          %2160 = sbr.rel (%p2158) target = $region100
        $region99: #{tpu_custom_call.1} parent=91 // pred_region
          %s2162 = ssub.s32 512, 512
          %2163 = vsyncadd %s2140, %s2162
          %s2164 = smul.addr %s41, 4
          %s2165 = sadd.s32 %s42, %s2164
          %s2166 = smul.addr %s2165, 128
          %s2167 = scalar_lea.hbm %s19, %s2166
          %s2168 = sshll.u32 %s2143, 4
          %s2169 = int_to_ptr.vmem [resolvable:$true] %s2168
          %2174 = dma.vmem_to_hbm [thread:$0]  %s2169, 512, %s2167, %s2140, 128, 128, 8
        $region100: #{tpu_custom_call.1} parent=91 // pred_fallthru
          _
      $region92: #{tpu_custom_call.1} parent=5 // pred_fallthru
        _
      %p2175 = scmp.le.s32.totalorder 2, %s32
      // Predicated region
      $region101: #{tpu_custom_call.1} parent=5 // pred_check
        %p2176 = pneg %p2175
      $region102: #{tpu_custom_call.1} parent=5 // pred_check_branch
        %2178 = sbr.rel (%p2176) target = $region104
      $region103: #{tpu_custom_call.1} parent=5 // pred_region
        %s2179 = ssub.s32 %s32, 2
        // Predicated region
        $region105: #{tpu_custom_call.1} parent=103 // pred_check
          %p2180 = pneg %p465
        $region106: #{tpu_custom_call.1} parent=103 // pred_check_branch
          %2182 = sbr.rel (%p2180) target = $region108
        $region107: #{tpu_custom_call.1} parent=103 // pred_region
          %s2183 = sand.u32 %s450, 1
          %s2184 = scalar_lea.sflag [#allocation3], %s2183
          %s2185 = sand.u32 %s450, 1
          %s2186 = smul.addr %s2185, 8
          %s2187 = scalar_lea.vmem [#allocation2], %s2186
          %2188 = dma.done %s2184, 128
        $region108: #{tpu_custom_call.1} parent=103 // pred_fallthru
          _
        // Predicated region
        $region109: #{tpu_custom_call.1} parent=103 // pred_check
          %p2189 = pneg %p493
        $region110: #{tpu_custom_call.1} parent=103 // pred_check_branch
          %2191 = sbr.rel (%p2189) target = $region112
        $region111: #{tpu_custom_call.1} parent=103 // pred_region
          %s2192 = sand.u32 %s478, 1
          %s2193 = scalar_lea.sflag [#allocation5], %s2192
          %s2194 = sand.u32 %s478, 1
          %s2195 = smul.addr %s2194, 32
          %s2196 = scalar_lea.vmem [#allocation4], %s2195
          %2197 = dma.done %s2193, 512
        $region112: #{tpu_custom_call.1} parent=103 // pred_fallthru
          _
      $region104: #{tpu_custom_call.1} parent=5 // pred_fallthru
        _
    $region6: #{tpu_custom_call.1} parent=1 // loop_footer
      %s36 = sadd.s32 1, %s32
    $region7: #{tpu_custom_call.1} parent=1 // loop_footer_branch
      %31 = sbr.rel target = $region3
    $region8: #{tpu_custom_call.1} parent=1 // loop_exit
      _
    %2198 = vsyncpa [#allocation3], 1
    %s2199 = scalar_lea.sflag [#allocation3], 1
    %2200 = vsyncpa %s2199, 1
    %2201 = vsyncpa [#allocation5], 1
    %s2202 = scalar_lea.sflag [#allocation5], 1
    %2203 = vsyncpa %s2202, 1

</llo_original>
